<compile_context>
chip_gen: v7x
topology: tpu7x:2x2x1
jax: 0.10.0
libtpu: 0.0.40
codegen_flags: <defaults>
</compile_context>

<pallas_src>
import jax
import jax.numpy as jnp
import numpy as np
from jax.experimental import pallas as pl
from jax.experimental.pallas import tpu as pltpu

GROUPS = 8
EPS = 1e-5          # GroupNorm eps and weight-standardization eps (fp32)


def _silu(x):
    return x * jax.nn.sigmoid(x)


def _weight_standardize(w_oihw):
    # matches WeightStandardizedConv2d (per output channel, unbiased=False)
    mean = jnp.mean(w_oihw, axis=(1, 2, 3), keepdims=True)
    var = jnp.var(w_oihw, axis=(1, 2, 3), keepdims=True)
    return (w_oihw - mean) * jax.lax.rsqrt(var + EPS)


def _pick_samples_per_step(B, HW, max_lanes=4096):
    """Pack several samples into the lane/M dimension per grid step, but keep
    >= 2 'parallel' grid steps when possible (v7x has 2 TensorCores)."""
    best = 1
    for d in range(1, B + 1):
        if B % d != 0:
            continue
        if B // d < min(B, 2):        # keep at least 2 grid steps if B >= 2
            continue
        if d * HW > max_lanes:        # keep per-step lane width modest
            continue
        best = max(best, d)
    return best


def _make_kernel(H, W, bpg):
    HW = H * W

    def kernel(x_ref, eg1_ref, eb1_ref, masks_ref, gmat_ref,
               w1_ref, b1_ref,
               w2_ref, b2_ref, g2_ref, bt2_ref,
               wfin_ref, wfr_ref, bout_ref,
               o_ref):
        Mb = x_ref.shape[1]                      # bpg * HW lanes per step

        x = x_ref[...]                           # (cin, Mb) f32
        masks = masks_ref[...]                   # (9, Mb)  f32 (0/1)
        gmat = gmat_ref[...]                     # (cmid, cmid) f32, pre-scaled

        def shift_lanes(v, s):
            # out[:, L] = v[:, (L + s) mod Mb]; wrapped lanes are masked later.
            s = s % Mb
            if s == 0:
                return v
            # jnp.roll semantics: out[:, L] = v[:, (L - shift) mod Mb]
            return pltpu.roll(v, shift=Mb - s, axis=1)     # XLU lane rotation

        def conv3x3(src, w_ref, b_ref):
            # src: (C_in, Mb) f32; w_ref: (C_out, 9*C_in) bf16; b_ref: (C_out,1)
            taps = []
            for dy in range(3):
                for dx in range(3):
                    s = (dy - 1) * W + (dx - 1)
                    t = shift_lanes(src, s)
                    if s != 0:
                        k = dy * 3 + dx
                        t = t * masks[k:k + 1, :]
                    taps.append(t)
            # single big-K im2col matmul on the MXU (bf16 operands, f32 accum)
            patch = jnp.concatenate(taps, axis=0).astype(jnp.bfloat16)
            out = jnp.dot(w_ref[...], patch, preferred_element_type=jnp.float32)
            return out + b_ref[...]

        def group_norm_affine(v, gamma_of, beta_of):
            # per-sample GroupNorm (two-pass centered variance) + affine.
            # lane-reduce first, then mix channels of the same group with a
            # tiny (cmid x cmid) @ (cmid x 1) matmul (gmat is pre-scaled so
            # the result is already the group mean).
            segs = []
            for b in range(bpg):
                seg = v[:, b * HW:(b + 1) * HW]                  # (cmid, HW)
                mean = jnp.dot(gmat,
                               jnp.sum(seg, axis=1, keepdims=True),
                               preferred_element_type=jnp.float32)
                xc = seg - mean
                var = jnp.dot(gmat,
                              jnp.sum(xc * xc, axis=1, keepdims=True),
                              preferred_element_type=jnp.float32)
                segs.append(xc * jax.lax.rsqrt(var + EPS)
                            * gamma_of(b) + beta_of(b))
            return segs[0] if bpg == 1 else jnp.concatenate(segs, axis=1)

        # ---- block1: WS-conv3x3 -> GroupNorm -> FiLM(scale,shift) -> SiLU ----
        # (FiLM is pre-folded into per-sample effective gamma/beta eg1/eb1.)
        h = conv3x3(x, w1_ref, b1_ref)
        h = group_norm_affine(h, lambda b: eg1_ref[b], lambda b: eb1_ref[b])
        h = _silu(h)

        # ---- block2: WS-conv3x3 -> GroupNorm -> SiLU --------------------------
        h = conv3x3(h, w2_ref, b2_ref)
        h = group_norm_affine(h, lambda b: g2_ref[...], lambda b: bt2_ref[...])
        h = _silu(h)

        # ---- final 1x1 conv with the residual 1x1 conv folded in --------------
        #   wfin @ (h + wres @ x + bres) + bfin
        # == wfin @ h + (wfin @ wres) @ x + (wfin @ bres + bfin)
        # (K = 16 / 24 with out_dim = 3: f32 operands, nothing gained by bf16)
        y = (jnp.dot(wfin_ref[...], h, preferred_element_type=jnp.float32)
             + jnp.dot(wfr_ref[...], x, preferred_element_type=jnp.float32)
             + bout_ref[...])

        # lane-dense (out_dim, HW) stores per sample
        for b in range(bpg):
            o_ref[b] = y[:, b * HW:(b + 1) * HW].astype(o_ref.dtype)

    return kernel


def outconv_forward(x, r, t, params):
    """x: (B, dim_in, H, W), r: (B, init_dim, h, w), t: (B, time_dim). NCHW in/out."""
    B, dim_in, H, W = x.shape
    init_dim = r.shape[1]
    out_dim = params['wfin'].shape[0]
    cin = dim_in + init_dim
    cmid = dim_in
    HW = H * W

    bpg = _pick_samples_per_step(B, HW)          # samples packed per grid step
    n_steps = B // bpg
    Mb = bpg * HW

    # ---- glue (XLA): bilinear upsample, concat, channels-first flatten -------
    r_up = jax.image.resize(r, (B, init_dim, H, W), method='bilinear',
                            antialias=False)
    xc = jnp.concatenate([x, r_up], axis=1)                      # (B, cin, H, W)
    x2d = jnp.transpose(xc, (1, 0, 2, 3)).reshape(cin, B * HW)   # sample-major lanes

    # ---- glue (XLA): time MLP hoisted out of the kernel -----------------------
    temb = _silu(t) @ params['wmlp'].T + params['bmlp']          # (B, 2*cmid)
    scale1 = temb[:, :cmid] + 1.0
    shift = temb[:, cmid:]
    # fold FiLM into per-sample effective GroupNorm affine for block1
    eg1 = (params['g1'][None, :] * scale1)[..., None]            # (B, cmid, 1)
    eb1 = (params['bt1'][None, :] * scale1 + shift)[..., None]   # (B, cmid, 1)

    # ---- glue: weight standardization + matmul layouts ------------------------
    def conv_mat(w):     # OIHW -> (O, (ky,kx,ci)) matching the tap concat order
        o = w.shape[0]
        return jnp.transpose(w, (0, 2, 3, 1)).reshape(o, -1).astype(jnp.bfloat16)

    col = lambda v: v.reshape(-1, 1).astype(jnp.float32)
    w1m = conv_mat(_weight_standardize(params['w1']))            # (cmid, 9*cin)
    w2m = conv_mat(_weight_standardize(params['w2']))            # (cmid, 9*cmid)

    # residual 1x1 conv folded into the final 1x1 conv (both are linear)
    wfinm = params['wfin'][:, :, 0, 0].astype(jnp.float32)       # (out_dim, cmid)
    wres2d = params['wres'][:, :, 0, 0].astype(jnp.float32)      # (cmid, cin)
    wfrm = wfinm @ wres2d                                        # (out_dim, cin)
    bout = wfinm @ params['bres'] + params['bfin']               # (out_dim,)

    # group-membership matrix pre-scaled so dot(gmat, per-channel-sum) is the
    # group mean for each channel
    cpg = cmid // GROUPS
    gi = np.arange(cmid) // cpg
    gmat = jnp.asarray((gi[:, None] == gi[None, :]).astype(np.float32)
                       / float(cpg * HW))

    # 3x3 tap validity masks on the flattened (unpadded) H*W grid,
    # pre-tiled to the full per-step lane width (bpg * HW)
    yy, xx = np.meshgrid(np.arange(H), np.arange(W), indexing='ij')
    masks_np = np.zeros((9, HW), np.float32)
    for dy in range(3):
        for dx in range(3):
            ok = ((yy + dy - 1 >= 0) & (yy + dy - 1 < H) &
                  (xx + dx - 1 >= 0) & (xx + dx - 1 < W))
            masks_np[dy * 3 + dx] = ok.reshape(-1)
    masks = jnp.asarray(np.tile(masks_np, (1, bpg)))             # (9, Mb)

    args = (x2d, eg1, eb1, masks, gmat,
            w1m, col(params['b1']),
            w2m, col(params['b2']), col(params['g2']), col(params['bt2']),
            wfinm, wfrm, col(bout))

    def full_spec(a):
        return pl.BlockSpec(a.shape, lambda g, n=a.ndim: (0,) * n)

    in_specs = [
        pl.BlockSpec((cin, Mb), lambda g: (0, g)),           # x2d
        pl.BlockSpec((bpg, cmid, 1), lambda g: (g, 0, 0)),   # eg1
        pl.BlockSpec((bpg, cmid, 1), lambda g: (g, 0, 0)),   # eb1
    ] + [full_spec(a) for a in args[3:]]

    out_specs = pl.BlockSpec((bpg, out_dim, HW), lambda g: (g, 0, 0))

    y = pl.pallas_call(
        _make_kernel(H, W, bpg),
        out_shape=jax.ShapeDtypeStruct((B, out_dim, HW), jnp.float32),
        grid_spec=pltpu.PrefetchScalarGridSpec(
            num_scalar_prefetch=0,
            grid=(n_steps,),
            in_specs=in_specs,
            out_specs=out_specs),
        compiler_params=pltpu.CompilerParams(
            dimension_semantics=("parallel",)),
    )(*args)
    return y.reshape(B, out_dim, H, W)            # pure reshape, no transpose


def outconv_reference(x, r, t, params):
    """Pure-JAX (non-Pallas) reference mirroring the PyTorch forward."""
    B, dim_in, H, W = x.shape
    init_dim = r.shape[1]
    r_up = jax.image.resize(r, (B, init_dim, H, W), method='bilinear',
                            antialias=False)
    xc = jnp.concatenate([x, r_up], axis=1)

    def conv(v, w, b):
        y = jax.lax.conv_general_dilated(
            v, w, (1, 1), 'SAME', dimension_numbers=('NCHW', 'OIHW', 'NCHW'))
        return y + b.reshape(1, -1, 1, 1)

    def gn(v, gamma, beta):
        Bv, C, Hv, Wv = v.shape
        vg = v.reshape(Bv, GROUPS, C // GROUPS, Hv, Wv)
        mean = jnp.mean(vg, axis=(2, 3, 4), keepdims=True)
        var = jnp.var(vg, axis=(2, 3, 4), keepdims=True)
        vn = ((vg - mean) * jax.lax.rsqrt(var + EPS)).reshape(Bv, C, Hv, Wv)
        return vn * gamma.reshape(1, -1, 1, 1) + beta.reshape(1, -1, 1, 1)

    temb = _silu(t) @ params['wmlp'].T + params['bmlp']
    scale, shift = jnp.split(temb, 2, axis=1)

    h = conv(xc, _weight_standardize(params['w1']), params['b1'])
    h = gn(h, params['g1'], params['bt1'])
    h = _silu(h * (scale[:, :, None, None] + 1.0) + shift[:, :, None, None])

    h = conv(h, _weight_standardize(params['w2']), params['b2'])
    h = gn(h, params['g2'], params['bt2'])
    h = _silu(h)

    h = h + conv(xc, params['wres'], params['bres'])
    return conv(h, params['wfin'], params['bfin'])


def init_params(key, dim_in, init_dim, out_dim, time_dim):
    cin = dim_in + init_dim
    cmid = dim_in
    ks = jax.random.split(key, 14)

    def u(k, shape, fan_in):
        b = 1.0 / float(np.sqrt(fan_in))
        return jax.random.uniform(k, shape, jnp.float32, -b, b)

    return dict(
        # block1: WeightStandardizedConv2d(cin, cmid, 3) + GroupNorm(8, cmid)
        w1=u(ks[0], (cmid, cin, 3, 3), cin * 9),
        b1=u(ks[1], (cmid,), cin * 9),
        g1=1.0 + 0.1 * jax.random.normal(ks[2], (cmid,), jnp.float32),
        bt1=0.1 * jax.random.normal(ks[3], (cmid,), jnp.float32),
        # block2: WeightStandardizedConv2d(cmid, cmid, 3) + GroupNorm(8, cmid)
        w2=u(ks[4], (cmid, cmid, 3, 3), cmid * 9),
        b2=u(ks[5], (cmid,), cmid * 9),
        g2=1.0 + 0.1 * jax.random.normal(ks[6], (cmid,), jnp.float32),
        bt2=0.1 * jax.random.normal(ks[7], (cmid,), jnp.float32),
        # residual 1x1 conv (cin -> cmid)
        wres=u(ks[8], (cmid, cin, 1, 1), cin),
        bres=u(ks[9], (cmid,), cin),
        # time MLP linear (time_dim -> 2*cmid)
        wmlp=u(ks[10], (2 * cmid, time_dim), time_dim),
        bmlp=u(ks[11], (2 * cmid,), time_dim),
        # final 1x1 conv (cmid -> out_dim)
        wfin=u(ks[12], (out_dim, cmid, 1, 1), cmid),
        bfin=u(ks[13], (out_dim,), cmid),
    )


if __name__ == "__main__":
    B, dim_in, init_dim, out_dim, time_dim = 2, 16, 8, 3, 32
    H = W = 16
    Hr = Wr = 8

    key = jax.random.PRNGKey(0)
    kx, kr, kt, kp = jax.random.split(key, 4)
    x = jax.random.normal(kx, (B, dim_in, H, W), jnp.float32)
    r = jax.random.normal(kr, (B, init_dim, Hr, Wr), jnp.float32)
    t = jax.random.normal(kt, (B, time_dim), jnp.float32)
    params = init_params(kp, dim_in, init_dim, out_dim, time_dim)

    y = jax.jit(outconv_forward)(x, r, t, params)
    y = jax.block_until_ready(y)
    assert y.shape == (B, out_dim, H, W)

    y_ref = outconv_reference(x, r, t, params)
    np.testing.assert_allclose(np.asarray(y), np.asarray(y_ref),
                               rtol=5e-2, atol=5e-2)
    print("KERNEL_OK")
</pallas_src>

<mosaic_0001>
module attributes {stable_mosaic.version = 11 : i64} {
  func.func @kernel(%arg0: i32, %arg1: memref<24x256xf32, #tpu.memory_space<vmem>>, %arg2: memref<1x16x1xf32, #tpu.memory_space<vmem>>, %arg3: memref<1x16x1xf32, #tpu.memory_space<vmem>>, %arg4: memref<9x256xf32, #tpu.memory_space<vmem>>, %arg5: memref<16x16xf32, #tpu.memory_space<vmem>>, %arg6: memref<16x216xbf16, #tpu.memory_space<vmem>>, %arg7: memref<16x1xf32, #tpu.memory_space<vmem>>, %arg8: memref<16x144xbf16, #tpu.memory_space<vmem>>, %arg9: memref<16x1xf32, #tpu.memory_space<vmem>>, %arg10: memref<16x1xf32, #tpu.memory_space<vmem>>, %arg11: memref<16x1xf32, #tpu.memory_space<vmem>>, %arg12: memref<3x16xf32, #tpu.memory_space<vmem>>, %arg13: memref<3x24xf32, #tpu.memory_space<vmem>>, %arg14: memref<3x1xf32, #tpu.memory_space<vmem>>, %arg15: memref<1x3x256xf32, #tpu.memory_space<vmem>>) attributes {dimension_semantics = [#tpu.dimension_semantics<parallel>], iteration_bounds = array<i64: 2>, scalar_prefetch = 0 : i64, scratch_operands = 0 : i64, tpu.core_type = #tpu.core_type<tc>, window_params = [{transform_indices = @transform_0, window_bounds = array<i64: 24, 256>}, {transform_indices = @transform_1, window_bounds = array<i64: 1, 16, 1>}, {transform_indices = @transform_2, window_bounds = array<i64: 1, 16, 1>}, {pipeline_mode = #tpu.pipeline_mode<synchronous>, transform_indices = @transform_3, window_bounds = array<i64: 9, 256>}, {pipeline_mode = #tpu.pipeline_mode<synchronous>, transform_indices = @transform_4, window_bounds = array<i64: 16, 16>}, {pipeline_mode = #tpu.pipeline_mode<synchronous>, transform_indices = @transform_5, window_bounds = array<i64: 16, 216>}, {pipeline_mode = #tpu.pipeline_mode<synchronous>, transform_indices = @transform_6, window_bounds = array<i64: 16, 1>}, {pipeline_mode = #tpu.pipeline_mode<synchronous>, transform_indices = @transform_7, window_bounds = array<i64: 16, 144>}, {pipeline_mode = #tpu.pipeline_mode<synchronous>, transform_indices = @transform_8, window_bounds = array<i64: 16, 1>}, {pipeline_mode = #tpu.pipeline_mode<synchronous>, transform_indices = @transform_9, window_bounds = array<i64: 16, 1>}, {pipeline_mode = #tpu.pipeline_mode<synchronous>, transform_indices = @transform_10, window_bounds = array<i64: 16, 1>}, {pipeline_mode = #tpu.pipeline_mode<synchronous>, transform_indices = @transform_11, window_bounds = array<i64: 3, 16>}, {pipeline_mode = #tpu.pipeline_mode<synchronous>, transform_indices = @transform_12, window_bounds = array<i64: 3, 24>}, {pipeline_mode = #tpu.pipeline_mode<synchronous>, transform_indices = @transform_13, window_bounds = array<i64: 3, 1>}, {transform_indices = @transform_14, window_bounds = array<i64: 1, 3, 256>}]} {
    %c0 = arith.constant 0 : index
    %c0_0 = arith.constant 0 : index
    %0 = vector.load %arg1[%c0, %c0_0] : memref<24x256xf32, #tpu.memory_space<vmem>>, vector<24x256xf32>
    %c0_1 = arith.constant 0 : index
    %c0_2 = arith.constant 0 : index
    %1 = vector.load %arg4[%c0_1, %c0_2] : memref<9x256xf32, #tpu.memory_space<vmem>>, vector<9x256xf32>
    %c0_3 = arith.constant 0 : index
    %c0_4 = arith.constant 0 : index
    %2 = vector.load %arg5[%c0_3, %c0_4] : memref<16x16xf32, #tpu.memory_space<vmem>>, vector<16x16xf32>
    %c17_i32 = arith.constant 17 : i32
    %3 = tpu.dynamic_rotate %0 by %c17_i32 dim 1 : vector<24x256xf32>, i32 -> vector<24x256xf32>
    %4 = vector.extract_strided_slice %1 {offsets = [0, 0], sizes = [1, 256], strides = [1, 1]} : vector<9x256xf32> to vector<1x256xf32>
    %5 = vector.broadcast %4 : vector<1x256xf32> to vector<24x256xf32>
    %6 = arith.mulf %3, %5 : vector<24x256xf32>
    %c16_i32 = arith.constant 16 : i32
    %7 = tpu.dynamic_rotate %0 by %c16_i32 dim 1 : vector<24x256xf32>, i32 -> vector<24x256xf32>
    %8 = vector.extract_strided_slice %1 {offsets = [1, 0], sizes = [1, 256], strides = [1, 1]} : vector<9x256xf32> to vector<1x256xf32>
    %9 = vector.broadcast %8 : vector<1x256xf32> to vector<24x256xf32>
    %10 = arith.mulf %7, %9 : vector<24x256xf32>
    %c15_i32 = arith.constant 15 : i32
    %11 = tpu.dynamic_rotate %0 by %c15_i32 dim 1 : vector<24x256xf32>, i32 -> vector<24x256xf32>
    %12 = vector.extract_strided_slice %1 {offsets = [2, 0], sizes = [1, 256], strides = [1, 1]} : vector<9x256xf32> to vector<1x256xf32>
    %13 = vector.broadcast %12 : vector<1x256xf32> to vector<24x256xf32>
    %14 = arith.mulf %11, %13 : vector<24x256xf32>
    %c1_i32 = arith.constant 1 : i32
    %15 = tpu.dynamic_rotate %0 by %c1_i32 dim 1 : vector<24x256xf32>, i32 -> vector<24x256xf32>
    %16 = vector.extract_strided_slice %1 {offsets = [3, 0], sizes = [1, 256], strides = [1, 1]} : vector<9x256xf32> to vector<1x256xf32>
    %17 = vector.broadcast %16 : vector<1x256xf32> to vector<24x256xf32>
    %18 = arith.mulf %15, %17 : vector<24x256xf32>
    %c255_i32 = arith.constant 255 : i32
    %19 = tpu.dynamic_rotate %0 by %c255_i32 dim 1 : vector<24x256xf32>, i32 -> vector<24x256xf32>
    %20 = vector.extract_strided_slice %1 {offsets = [5, 0], sizes = [1, 256], strides = [1, 1]} : vector<9x256xf32> to vector<1x256xf32>
    %21 = vector.broadcast %20 : vector<1x256xf32> to vector<24x256xf32>
    %22 = arith.mulf %19, %21 : vector<24x256xf32>
    %c241_i32 = arith.constant 241 : i32
    %23 = tpu.dynamic_rotate %0 by %c241_i32 dim 1 : vector<24x256xf32>, i32 -> vector<24x256xf32>
    %24 = vector.extract_strided_slice %1 {offsets = [6, 0], sizes = [1, 256], strides = [1, 1]} : vector<9x256xf32> to vector<1x256xf32>
    %25 = vector.broadcast %24 : vector<1x256xf32> to vector<24x256xf32>
    %26 = arith.mulf %23, %25 : vector<24x256xf32>
    %c240_i32 = arith.constant 240 : i32
    %27 = tpu.dynamic_rotate %0 by %c240_i32 dim 1 : vector<24x256xf32>, i32 -> vector<24x256xf32>
    %28 = vector.extract_strided_slice %1 {offsets = [7, 0], sizes = [1, 256], strides = [1, 1]} : vector<9x256xf32> to vector<1x256xf32>
    %29 = vector.broadcast %28 : vector<1x256xf32> to vector<24x256xf32>
    %30 = arith.mulf %27, %29 : vector<24x256xf32>
    %c239_i32 = arith.constant 239 : i32
    %31 = tpu.dynamic_rotate %0 by %c239_i32 dim 1 : vector<24x256xf32>, i32 -> vector<24x256xf32>
    %32 = vector.extract_strided_slice %1 {offsets = [8, 0], sizes = [1, 256], strides = [1, 1]} : vector<9x256xf32> to vector<1x256xf32>
    %33 = vector.broadcast %32 : vector<1x256xf32> to vector<24x256xf32>
    %34 = arith.mulf %31, %33 : vector<24x256xf32>
    %35 = tpu.concatenate %6, %10, %14, %18, %0, %22, %26, %30, %34 in 0 : vector<24x256xf32>, vector<24x256xf32>, vector<24x256xf32>, vector<24x256xf32>, vector<24x256xf32>, vector<24x256xf32>, vector<24x256xf32>, vector<24x256xf32>, vector<24x256xf32> -> vector<216x256xf32>
    %36 = arith.truncf %35 : vector<216x256xf32> to vector<216x256xbf16>
    %c0_5 = arith.constant 0 : index
    %c0_6 = arith.constant 0 : index
    %37 = vector.load %arg6[%c0_5, %c0_6] : memref<16x216xbf16, #tpu.memory_space<vmem>>, vector<16x216xbf16>
    %cst = arith.constant dense<0.000000e+00> : vector<16x256xf32>
    %38 = tpu.matmul %37, %36, %cst {dimension_numbers = #tpu.dot_dimension_numbers<[1], [0], [0], [1], [0, 0, 1, 1], [], []>} : vector<16x216xbf16>, vector<216x256xbf16>, vector<16x256xf32> -> vector<16x256xf32>
    %c0_7 = arith.constant 0 : index
    %c0_8 = arith.constant 0 : index
    %39 = vector.load %arg7[%c0_7, %c0_8] : memref<16x1xf32, #tpu.memory_space<vmem>>, vector<16x1xf32>
    %40 = vector.broadcast %39 : vector<16x1xf32> to vector<16x256xf32>
    %41 = arith.addf %38, %40 : vector<16x256xf32>
    %cst_9 = arith.constant dense<0.000000e+00> : vector<16xf32>
    %42 = vector.multi_reduction <add>, %41, %cst_9 [1] : vector<16x256xf32> to vector<16xf32>
    %43 = vector.shape_cast %42 : vector<16xf32> to vector<16x1xf32>
    %cst_10 = arith.constant dense<0.000000e+00> : vector<16x1xf32>
    %44 = tpu.matmul %2, %43, %cst_10 {dimension_numbers = #tpu.dot_dimension_numbers<[1], [0], [0], [1], [0, 0, 1, 1], [], []>} : vector<16x16xf32>, vector<16x1xf32>, vector<16x1xf32> -> vector<16x1xf32>
    %45 = vector.broadcast %44 : vector<16x1xf32> to vector<16x256xf32>
    %46 = arith.subf %41, %45 : vector<16x256xf32>
    %47 = arith.mulf %46, %46 : vector<16x256xf32>
    %cst_11 = arith.constant dense<0.000000e+00> : vector<16xf32>
    %48 = vector.multi_reduction <add>, %47, %cst_11 [1] : vector<16x256xf32> to vector<16xf32>
    %49 = vector.shape_cast %48 : vector<16xf32> to vector<16x1xf32>
    %cst_12 = arith.constant dense<0.000000e+00> : vector<16x1xf32>
    %50 = tpu.matmul %2, %49, %cst_12 {dimension_numbers = #tpu.dot_dimension_numbers<[1], [0], [0], [1], [0, 0, 1, 1], [], []>} : vector<16x16xf32>, vector<16x1xf32>, vector<16x1xf32> -> vector<16x1xf32>
    %cst_13 = arith.constant 9.99999974E-6 : f32
    %51 = vector.broadcast %cst_13 : f32 to vector<16x1xf32>
    %52 = arith.addf %50, %51 : vector<16x1xf32>
    %53 = math.rsqrt %52 : vector<16x1xf32>
    %54 = vector.broadcast %53 : vector<16x1xf32> to vector<16x256xf32>
    %55 = arith.mulf %46, %54 : vector<16x256xf32>
    %c0_14 = arith.constant 0 : index
    %c0_15 = arith.constant 0 : index
    %c0_16 = arith.constant 0 : index
    %56 = vector.load %arg2[%c0_14, %c0_15, %c0_16] : memref<1x16x1xf32, #tpu.memory_space<vmem>>, vector<1x16x1xf32>
    %57 = vector.shape_cast %56 : vector<1x16x1xf32> to vector<16x1xf32>
    %58 = vector.broadcast %57 : vector<16x1xf32> to vector<16x256xf32>
    %59 = arith.mulf %55, %58 : vector<16x256xf32>
    %c0_17 = arith.constant 0 : index
    %c0_18 = arith.constant 0 : index
    %c0_19 = arith.constant 0 : index
    %60 = vector.load %arg3[%c0_17, %c0_18, %c0_19] : memref<1x16x1xf32, #tpu.memory_space<vmem>>, vector<1x16x1xf32>
    %61 = vector.shape_cast %60 : vector<1x16x1xf32> to vector<16x1xf32>
    %62 = vector.broadcast %61 : vector<16x1xf32> to vector<16x256xf32>
    %63 = arith.addf %59, %62 : vector<16x256xf32>
    %64 = arith.negf %63 : vector<16x256xf32>
    %65 = math.exp %64 : vector<16x256xf32>
    %cst_20 = arith.constant 1.000000e+00 : f32
    %66 = vector.broadcast %cst_20 : f32 to vector<16x256xf32>
    %67 = arith.addf %66, %65 : vector<16x256xf32>
    %68 = arith.divf %66, %67 : vector<16x256xf32>
    %69 = arith.mulf %63, %68 : vector<16x256xf32>
    %c17_i32_21 = arith.constant 17 : i32
    %70 = tpu.dynamic_rotate %69 by %c17_i32_21 dim 1 : vector<16x256xf32>, i32 -> vector<16x256xf32>
    %71 = vector.extract_strided_slice %1 {offsets = [0, 0], sizes = [1, 256], strides = [1, 1]} : vector<9x256xf32> to vector<1x256xf32>
    %72 = vector.broadcast %71 : vector<1x256xf32> to vector<16x256xf32>
    %73 = arith.mulf %70, %72 : vector<16x256xf32>
    %c16_i32_22 = arith.constant 16 : i32
    %74 = tpu.dynamic_rotate %69 by %c16_i32_22 dim 1 : vector<16x256xf32>, i32 -> vector<16x256xf32>
    %75 = vector.extract_strided_slice %1 {offsets = [1, 0], sizes = [1, 256], strides = [1, 1]} : vector<9x256xf32> to vector<1x256xf32>
    %76 = vector.broadcast %75 : vector<1x256xf32> to vector<16x256xf32>
    %77 = arith.mulf %74, %76 : vector<16x256xf32>
    %c15_i32_23 = arith.constant 15 : i32
    %78 = tpu.dynamic_rotate %69 by %c15_i32_23 dim 1 : vector<16x256xf32>, i32 -> vector<16x256xf32>
    %79 = vector.extract_strided_slice %1 {offsets = [2, 0], sizes = [1, 256], strides = [1, 1]} : vector<9x256xf32> to vector<1x256xf32>
    %80 = vector.broadcast %79 : vector<1x256xf32> to vector<16x256xf32>
    %81 = arith.mulf %78, %80 : vector<16x256xf32>
    %c1_i32_24 = arith.constant 1 : i32
    %82 = tpu.dynamic_rotate %69 by %c1_i32_24 dim 1 : vector<16x256xf32>, i32 -> vector<16x256xf32>
    %83 = vector.extract_strided_slice %1 {offsets = [3, 0], sizes = [1, 256], strides = [1, 1]} : vector<9x256xf32> to vector<1x256xf32>
    %84 = vector.broadcast %83 : vector<1x256xf32> to vector<16x256xf32>
    %85 = arith.mulf %82, %84 : vector<16x256xf32>
    %c255_i32_25 = arith.constant 255 : i32
    %86 = tpu.dynamic_rotate %69 by %c255_i32_25 dim 1 : vector<16x256xf32>, i32 -> vector<16x256xf32>
    %87 = vector.extract_strided_slice %1 {offsets = [5, 0], sizes = [1, 256], strides = [1, 1]} : vector<9x256xf32> to vector<1x256xf32>
    %88 = vector.broadcast %87 : vector<1x256xf32> to vector<16x256xf32>
    %89 = arith.mulf %86, %88 : vector<16x256xf32>
    %c241_i32_26 = arith.constant 241 : i32
    %90 = tpu.dynamic_rotate %69 by %c241_i32_26 dim 1 : vector<16x256xf32>, i32 -> vector<16x256xf32>
    %91 = vector.extract_strided_slice %1 {offsets = [6, 0], sizes = [1, 256], strides = [1, 1]} : vector<9x256xf32> to vector<1x256xf32>
    %92 = vector.broadcast %91 : vector<1x256xf32> to vector<16x256xf32>
    %93 = arith.mulf %90, %92 : vector<16x256xf32>
    %c240_i32_27 = arith.constant 240 : i32
    %94 = tpu.dynamic_rotate %69 by %c240_i32_27 dim 1 : vector<16x256xf32>, i32 -> vector<16x256xf32>
    %95 = vector.extract_strided_slice %1 {offsets = [7, 0], sizes = [1, 256], strides = [1, 1]} : vector<9x256xf32> to vector<1x256xf32>
    %96 = vector.broadcast %95 : vector<1x256xf32> to vector<16x256xf32>
    %97 = arith.mulf %94, %96 : vector<16x256xf32>
    %c239_i32_28 = arith.constant 239 : i32
    %98 = tpu.dynamic_rotate %69 by %c239_i32_28 dim 1 : vector<16x256xf32>, i32 -> vector<16x256xf32>
    %99 = vector.extract_strided_slice %1 {offsets = [8, 0], sizes = [1, 256], strides = [1, 1]} : vector<9x256xf32> to vector<1x256xf32>
    %100 = vector.broadcast %99 : vector<1x256xf32> to vector<16x256xf32>
    %101 = arith.mulf %98, %100 : vector<16x256xf32>
    %102 = tpu.concatenate %73, %77, %81, %85, %69, %89, %93, %97, %101 in 0 : vector<16x256xf32>, vector<16x256xf32>, vector<16x256xf32>, vector<16x256xf32>, vector<16x256xf32>, vector<16x256xf32>, vector<16x256xf32>, vector<16x256xf32>, vector<16x256xf32> -> vector<144x256xf32>
    %103 = arith.truncf %102 : vector<144x256xf32> to vector<144x256xbf16>
    %c0_29 = arith.constant 0 : index
    %c0_30 = arith.constant 0 : index
    %104 = vector.load %arg8[%c0_29, %c0_30] : memref<16x144xbf16, #tpu.memory_space<vmem>>, vector<16x144xbf16>
    %cst_31 = arith.constant dense<0.000000e+00> : vector<16x256xf32>
    %105 = tpu.matmul %104, %103, %cst_31 {dimension_numbers = #tpu.dot_dimension_numbers<[1], [0], [0], [1], [0, 0, 1, 1], [], []>} : vector<16x144xbf16>, vector<144x256xbf16>, vector<16x256xf32> -> vector<16x256xf32>
    %c0_32 = arith.constant 0 : index
    %c0_33 = arith.constant 0 : index
    %106 = vector.load %arg9[%c0_32, %c0_33] : memref<16x1xf32, #tpu.memory_space<vmem>>, vector<16x1xf32>
    %107 = vector.broadcast %106 : vector<16x1xf32> to vector<16x256xf32>
    %108 = arith.addf %105, %107 : vector<16x256xf32>
    %cst_34 = arith.constant dense<0.000000e+00> : vector<16xf32>
    %109 = vector.multi_reduction <add>, %108, %cst_34 [1] : vector<16x256xf32> to vector<16xf32>
    %110 = vector.shape_cast %109 : vector<16xf32> to vector<16x1xf32>
    %cst_35 = arith.constant dense<0.000000e+00> : vector<16x1xf32>
    %111 = tpu.matmul %2, %110, %cst_35 {dimension_numbers = #tpu.dot_dimension_numbers<[1], [0], [0], [1], [0, 0, 1, 1], [], []>} : vector<16x16xf32>, vector<16x1xf32>, vector<16x1xf32> -> vector<16x1xf32>
    %112 = vector.broadcast %111 : vector<16x1xf32> to vector<16x256xf32>
    %113 = arith.subf %108, %112 : vector<16x256xf32>
    %114 = arith.mulf %113, %113 : vector<16x256xf32>
    %cst_36 = arith.constant dense<0.000000e+00> : vector<16xf32>
    %115 = vector.multi_reduction <add>, %114, %cst_36 [1] : vector<16x256xf32> to vector<16xf32>
    %116 = vector.shape_cast %115 : vector<16xf32> to vector<16x1xf32>
    %cst_37 = arith.constant dense<0.000000e+00> : vector<16x1xf32>
    %117 = tpu.matmul %2, %116, %cst_37 {dimension_numbers = #tpu.dot_dimension_numbers<[1], [0], [0], [1], [0, 0, 1, 1], [], []>} : vector<16x16xf32>, vector<16x1xf32>, vector<16x1xf32> -> vector<16x1xf32>
    %cst_38 = arith.constant 9.99999974E-6 : f32
    %118 = vector.broadcast %cst_38 : f32 to vector<16x1xf32>
    %119 = arith.addf %117, %118 : vector<16x1xf32>
    %120 = math.rsqrt %119 : vector<16x1xf32>
    %121 = vector.broadcast %120 : vector<16x1xf32> to vector<16x256xf32>
    %122 = arith.mulf %113, %121 : vector<16x256xf32>
    %c0_39 = arith.constant 0 : index
    %c0_40 = arith.constant 0 : index
    %123 = vector.load %arg10[%c0_39, %c0_40] : memref<16x1xf32, #tpu.memory_space<vmem>>, vector<16x1xf32>
    %124 = vector.broadcast %123 : vector<16x1xf32> to vector<16x256xf32>
    %125 = arith.mulf %122, %124 : vector<16x256xf32>
    %c0_41 = arith.constant 0 : index
    %c0_42 = arith.constant 0 : index
    %126 = vector.load %arg11[%c0_41, %c0_42] : memref<16x1xf32, #tpu.memory_space<vmem>>, vector<16x1xf32>
    %127 = vector.broadcast %126 : vector<16x1xf32> to vector<16x256xf32>
    %128 = arith.addf %125, %127 : vector<16x256xf32>
    %129 = arith.negf %128 : vector<16x256xf32>
    %130 = math.exp %129 : vector<16x256xf32>
    %cst_43 = arith.constant 1.000000e+00 : f32
    %131 = vector.broadcast %cst_43 : f32 to vector<16x256xf32>
    %132 = arith.addf %131, %130 : vector<16x256xf32>
    %133 = arith.divf %131, %132 : vector<16x256xf32>
    %134 = arith.mulf %128, %133 : vector<16x256xf32>
    %c0_44 = arith.constant 0 : index
    %c0_45 = arith.constant 0 : index
    %135 = vector.load %arg12[%c0_44, %c0_45] : memref<3x16xf32, #tpu.memory_space<vmem>>, vector<3x16xf32>
    %cst_46 = arith.constant dense<0.000000e+00> : vector<3x256xf32>
    %136 = tpu.matmul %135, %134, %cst_46 {dimension_numbers = #tpu.dot_dimension_numbers<[1], [0], [0], [1], [0, 0, 1, 1], [], []>} : vector<3x16xf32>, vector<16x256xf32>, vector<3x256xf32> -> vector<3x256xf32>
    %c0_47 = arith.constant 0 : index
    %c0_48 = arith.constant 0 : index
    %137 = vector.load %arg13[%c0_47, %c0_48] : memref<3x24xf32, #tpu.memory_space<vmem>>, vector<3x24xf32>
    %cst_49 = arith.constant dense<0.000000e+00> : vector<3x256xf32>
    %138 = tpu.matmul %137, %0, %cst_49 {dimension_numbers = #tpu.dot_dimension_numbers<[1], [0], [0], [1], [0, 0, 1, 1], [], []>} : vector<3x24xf32>, vector<24x256xf32>, vector<3x256xf32> -> vector<3x256xf32>
    %139 = arith.addf %136, %138 : vector<3x256xf32>
    %c0_50 = arith.constant 0 : index
    %c0_51 = arith.constant 0 : index
    %140 = vector.load %arg14[%c0_50, %c0_51] : memref<3x1xf32, #tpu.memory_space<vmem>>, vector<3x1xf32>
    %141 = vector.broadcast %140 : vector<3x1xf32> to vector<3x256xf32>
    %142 = arith.addf %139, %141 : vector<3x256xf32>
    %c0_52 = arith.constant 0 : index
    %c0_53 = arith.constant 0 : index
    %c0_54 = arith.constant 0 : index
    %143 = vector.load %arg15[%c0_52, %c0_53, %c0_54] : memref<1x3x256xf32, #tpu.memory_space<vmem>>, vector<1x3x256xf32>
    %144 = vector.shape_cast %143 : vector<1x3x256xf32> to vector<3x256xf32>
    %145 = vector.shape_cast %142 : vector<3x256xf32> to vector<1x3x256xf32>
    tpu.vector_store %arg15[%c0_52, %c0_53, %c0_54], %145 {strides = array<i32>} : memref<1x3x256xf32, #tpu.memory_space<vmem>>, vector<1x3x256xf32>,
    return
  }
  func.func @transform_0(%arg0: i32) -> (i32, i32) {
    %c0_i32 = arith.constant 0 : i32
    %c0_i32_0 = arith.constant 0 : i32
    return %c0_i32, %arg0 : i32, i32
  }
  func.func @transform_1(%arg0: i32) -> (i32, i32, i32) {
    %c0_i32 = arith.constant 0 : i32
    %c0_i32_0 = arith.constant 0 : i32
    %c0_i32_1 = arith.constant 0 : i32
    return %arg0, %c0_i32, %c0_i32_0 : i32, i32, i32
  }
  func.func @transform_2(%arg0: i32) -> (i32, i32, i32) {
    %c0_i32 = arith.constant 0 : i32
    %c0_i32_0 = arith.constant 0 : i32
    %c0_i32_1 = arith.constant 0 : i32
    return %arg0, %c0_i32, %c0_i32_0 : i32, i32, i32
  }
  func.func @transform_3(%arg0: i32) -> (i32, i32) {
    %c0_i32 = arith.constant 0 : i32
    %c0_i32_0 = arith.constant 0 : i32
    %c0_i32_1 = arith.constant 0 : i32
    return %c0_i32, %c0_i32_0 : i32, i32
  }
  func.func @transform_4(%arg0: i32) -> (i32, i32) {
    %c0_i32 = arith.constant 0 : i32
    %c0_i32_0 = arith.constant 0 : i32
    %c0_i32_1 = arith.constant 0 : i32
    return %c0_i32, %c0_i32_0 : i32, i32
  }
  func.func @transform_5(%arg0: i32) -> (i32, i32) {
    %c0_i32 = arith.constant 0 : i32
    %c0_i32_0 = arith.constant 0 : i32
    %c0_i32_1 = arith.constant 0 : i32
    return %c0_i32, %c0_i32_0 : i32, i32
  }
  func.func @transform_6(%arg0: i32) -> (i32, i32) {
    %c0_i32 = arith.constant 0 : i32
    %c0_i32_0 = arith.constant 0 : i32
    %c0_i32_1 = arith.constant 0 : i32
    return %c0_i32, %c0_i32_0 : i32, i32
  }
  func.func @transform_7(%arg0: i32) -> (i32, i32) {
    %c0_i32 = arith.constant 0 : i32
    %c0_i32_0 = arith.constant 0 : i32
    %c0_i32_1 = arith.constant 0 : i32
    return %c0_i32, %c0_i32_0 : i32, i32
  }
  func.func @transform_8(%arg0: i32) -> (i32, i32) {
    %c0_i32 = arith.constant 0 : i32
    %c0_i32_0 = arith.constant 0 : i32
    %c0_i32_1 = arith.constant 0 : i32
    return %c0_i32, %c0_i32_0 : i32, i32
  }
  func.func @transform_9(%arg0: i32) -> (i32, i32) {
    %c0_i32 = arith.constant 0 : i32
    %c0_i32_0 = arith.constant 0 : i32
    %c0_i32_1 = arith.constant 0 : i32
    return %c0_i32, %c0_i32_0 : i32, i32
  }
  func.func @transform_10(%arg0: i32) -> (i32, i32) {
    %c0_i32 = arith.constant 0 : i32
    %c0_i32_0 = arith.constant 0 : i32
    %c0_i32_1 = arith.constant 0 : i32
    return %c0_i32, %c0_i32_0 : i32, i32
  }
  func.func @transform_11(%arg0: i32) -> (i32, i32) {
    %c0_i32 = arith.constant 0 : i32
    %c0_i32_0 = arith.constant 0 : i32
    %c0_i32_1 = arith.constant 0 : i32
    return %c0_i32, %c0_i32_0 : i32, i32
  }
  func.func @transform_12(%arg0: i32) -> (i32, i32) {
    %c0_i32 = arith.constant 0 : i32
    %c0_i32_0 = arith.constant 0 : i32
    %c0_i32_1 = arith.constant 0 : i32
    return %c0_i32, %c0_i32_0 : i32, i32
  }
  func.func @transform_13(%arg0: i32) -> (i32, i32) {
    %c0_i32 = arith.constant 0 : i32
    %c0_i32_0 = arith.constant 0 : i32
    %c0_i32_1 = arith.constant 0 : i32
    return %c0_i32, %c0_i32_0 : i32, i32
  }
  func.func @transform_14(%arg0: i32) -> (i32, i32, i32) {
    %c0_i32 = arith.constant 0 : i32
    %c0_i32_0 = arith.constant 0 : i32
    %c0_i32_1 = arith.constant 0 : i32
    return %arg0, %c0_i32, %c0_i32_0 : i32, i32, i32
  }
}

</mosaic_0001>

<llo_original>
// kernel: outconv_forward.1
$region0: #{outconv_forward.1}
  #allocation0 [shape = 'u32[]', space=smem, size = 0x4, offset = 0x4, fixed_abs, tag = 'smem constant byte address 0x4 - core index']
  #allocation1 [shape = 'u32[144,128]{1,0:T(1,128)}', space=vmem, size = 0x12000, scoped, tag = 'internal scratch']
  %s0 = inlined_call_operand.vmem [shape: f32[24,512], index: 0, kind: input, shape index: {}]
  %s1 = inlined_call_operand.vmem [shape: f32[2,16,1], index: 1, kind: input, shape index: {}]
  %s2 = inlined_call_operand.vmem [shape: f32[2,16,1], index: 2, kind: input, shape index: {}]
  %s3 = inlined_call_operand.vmem [shape: f32[9,256], index: 3, kind: input, shape index: {}]
  %s4 = inlined_call_operand.vmem [shape: f32[16,16], index: 4, kind: input, shape index: {}]
  %s5 = inlined_call_operand.vmem [shape: bf16[16,216], index: 5, kind: input, shape index: {}]
  %s6 = inlined_call_operand.vmem [shape: f32[16,1], index: 6, kind: input, shape index: {}]
  %s7 = inlined_call_operand.vmem [shape: bf16[16,144], index: 7, kind: input, shape index: {}]
  %s8 = inlined_call_operand.vmem [shape: f32[16,1], index: 8, kind: input, shape index: {}]
  %s9 = inlined_call_operand.vmem [shape: f32[16,1], index: 9, kind: input, shape index: {}]
  %s10 = inlined_call_operand.vmem [shape: f32[16,1], index: 10, kind: input, shape index: {}]
  %s11 = inlined_call_operand.vmem [shape: f32[3,16], index: 11, kind: input, shape index: {}]
  %s12 = inlined_call_operand.vmem [shape: f32[3,24], index: 12, kind: input, shape index: {}]
  %s13 = inlined_call_operand.vmem [shape: f32[3,1], index: 13, kind: input, shape index: {}]
  %s14 = inlined_call_operand.vmem [shape: f32[2,3,256], index: 14, kind: output, shape index: {}]
  %s15 = sld [smem:[#allocation0]]
  $region112: #{outconv_forward.1} parent=0
    _
  %s17 = ssub.s32 1, %s15
  %s18 = scalar_select 0, %s17, %s15
  $region1: #{outconv_forward.1} parent=0
    #allocation2 [shape = 'u8[49152]{0}', space=vmem, size = 0xc000, scoped, tag = 'input window, operand 0']
    loop: start=0, step=1, limit=4
    $region2: #{outconv_forward.1} parent=1 // loop_pre_header
      _
    $region3: #{outconv_forward.1} parent=1 // loop_header
      %s20 = sphi 0, %s24
      %p21 = scmp.ge.s32.totalorder %s20, 4
      %s30 = sphi 0, %s32
      %s33 = sphi 0, %s30
      %s34 = sphi 0, %s33
      %s50 = sphi 0, %s34
      %s56 = sphi 0, %s58
      %s59 = sphi 0, %s56
      %s60 = sphi 0, %s59
      %s76 = sphi 0, %s60
      %s82 = sphi 0, %s84
      %s85 = sphi 0, %s82
      %s86 = sphi 0, %s85
      %s102 = sphi 0, %s86
      %s106 = sphi 0, %s106
      %s108 = sphi 0, %s106
      %s109 = sphi 0, %s108
      %s123 = sphi 0, %s109
      %s127 = sphi 0, %s127
      %s129 = sphi 0, %s127
      %s130 = sphi 0, %s129
      %s144 = sphi 0, %s130
      %s148 = sphi 0, %s148
      %s150 = sphi 0, %s148
      %s151 = sphi 0, %s150
      %s165 = sphi 0, %s151
      %s169 = sphi 0, %s169
      %s171 = sphi 0, %s169
      %s172 = sphi 0, %s171
      %s186 = sphi 0, %s172
      %s190 = sphi 0, %s190
      %s192 = sphi 0, %s190
      %s193 = sphi 0, %s192
      %s207 = sphi 0, %s193
      %s211 = sphi 0, %s211
      %s213 = sphi 0, %s211
      %s214 = sphi 0, %s213
      %s228 = sphi 0, %s214
      %s232 = sphi 0, %s232
      %s234 = sphi 0, %s232
      %s235 = sphi 0, %s234
      %s249 = sphi 0, %s235
      %s253 = sphi 0, %s253
      %s255 = sphi 0, %s253
      %s256 = sphi 0, %s255
      %s270 = sphi 0, %s256
      %s274 = sphi 0, %s274
      %s276 = sphi 0, %s274
      %s277 = sphi 0, %s276
      %s291 = sphi 0, %s277
      %s295 = sphi 0, %s295
      %s297 = sphi 0, %s295
      %s298 = sphi 0, %s297
      %s312 = sphi 0, %s298
      %s316 = sphi 0, %s316
      %s318 = sphi 0, %s316
      %s319 = sphi 0, %s318
      %s333 = sphi 0, %s319
      %s339 = sphi 0, %s341
      %s342 = sphi 0, %s339
      %s343 = sphi 0, %s342
      %s359 = sphi 0, %s343
    $region4: #{outconv_forward.1} parent=1 // loop_header_branch
      %23 = sbr.rel (%p21) target = $region8
    $region5: #{outconv_forward.1} parent=1 // loop_body
      %s25 = ssub.s32 %s20, 1
      %s26 = ssub.s32 %s20, 2
      %s27 = sadd.s32 %s20, 1
      %s28 = ssub.s32 %s20, %s27
      %p29 = scmp.eq.s32.totalorder %s28, 0
      %s31 = sadd.s32 %s30, 1
      %s32 = scalar_select %p29, %s30, %s31
      %p35 = pneg %p29
      %p36 = scmp.eq.s32.totalorder %s20, 1
      %p37 = por %p35, %p36
      %p38 = scmp.ne.s32.totalorder %s30, %s33
      %p39 = scmp.eq.s32.totalorder %s20, 0
      %p40 = por %p38, %p39
      %p41 = scmp.ne.s32.totalorder %s30, %s33
      %p42 = scmp.eq.s32.totalorder %s25, 1
      %p43 = por %p41, %p42
      %p44 = scmp.ne.s32.totalorder %s33, %s34
      %p45 = scmp.eq.s32.totalorder %s25, 0
      %p46 = por %p44, %p45
      %p47 = scmp.ne.s32.totalorder %s33, %s34
      %p48 = scmp.eq.s32.totalorder %s26, 1
      %p49 = por %p47, %p48
      %p51 = scmp.ne.s32.totalorder %s34, %s50
      %p52 = scmp.eq.s32.totalorder %s26, 0
      %p53 = por %p51, %p52
      %s54 = ssub.s32 %s20, %s27
      %p55 = scmp.eq.s32.totalorder %s54, 0
      %s57 = sadd.s32 %s56, 1
      %s58 = scalar_select %p55, %s56, %s57
      %p61 = pneg %p55
      %p62 = scmp.eq.s32.totalorder %s20, 1
      %p63 = por %p61, %p62
      %p64 = scmp.ne.s32.totalorder %s56, %s59
      %p65 = scmp.eq.s32.totalorder %s20, 0
      %p66 = por %p64, %p65
      %p67 = scmp.ne.s32.totalorder %s56, %s59
      %p68 = scmp.eq.s32.totalorder %s25, 1
      %p69 = por %p67, %p68
      %p70 = scmp.ne.s32.totalorder %s59, %s60
      %p71 = scmp.eq.s32.totalorder %s25, 0
      %p72 = por %p70, %p71
      %p73 = scmp.ne.s32.totalorder %s59, %s60
      %p74 = scmp.eq.s32.totalorder %s26, 1
      %p75 = por %p73, %p74
      %p77 = scmp.ne.s32.totalorder %s60, %s76
      %p78 = scmp.eq.s32.totalorder %s26, 0
      %p79 = por %p77, %p78
      %s80 = ssub.s32 %s20, %s27
      %p81 = scmp.eq.s32.totalorder %s80, 0
      %s83 = sadd.s32 %s82, 1
      %s84 = scalar_select %p81, %s82, %s83
      %p87 = pneg %p81
      %p88 = scmp.eq.s32.totalorder %s20, 1
      %p89 = por %p87, %p88
      %p90 = scmp.ne.s32.totalorder %s82, %s85
      %p91 = scmp.eq.s32.totalorder %s20, 0
      %p92 = por %p90, %p91
      %p93 = scmp.ne.s32.totalorder %s82, %s85
      %p94 = scmp.eq.s32.totalorder %s25, 1
      %p95 = por %p93, %p94
      %p96 = scmp.ne.s32.totalorder %s85, %s86
      %p97 = scmp.eq.s32.totalorder %s25, 0
      %p98 = por %p96, %p97
      %p99 = scmp.ne.s32.totalorder %s85, %s86
      %p100 = scmp.eq.s32.totalorder %s26, 1
      %p101 = por %p99, %p100
      %p103 = scmp.ne.s32.totalorder %s86, %s102
      %p104 = scmp.eq.s32.totalorder %s26, 0
      %p105 = por %p103, %p104
      %s107 = sadd.s32 %s106, 1
      %p110 = scmp.eq.s32.totalorder %s20, 1
      %p111 = scmp.ne.s32.totalorder %s106, %s108
      %p112 = scmp.eq.s32.totalorder %s20, 0
      %p113 = por %p111, %p112
      %p114 = scmp.ne.s32.totalorder %s106, %s108
      %p115 = scmp.eq.s32.totalorder %s25, 1
      %p116 = por %p114, %p115
      %p117 = scmp.ne.s32.totalorder %s108, %s109
      %p118 = scmp.eq.s32.totalorder %s25, 0
      %p119 = por %p117, %p118
      %p120 = scmp.ne.s32.totalorder %s108, %s109
      %p121 = scmp.eq.s32.totalorder %s26, 1
      %p122 = por %p120, %p121
      %p124 = scmp.ne.s32.totalorder %s109, %s123
      %p125 = scmp.eq.s32.totalorder %s26, 0
      %p126 = por %p124, %p125
      %s128 = sadd.s32 %s127, 1
      %p131 = scmp.eq.s32.totalorder %s20, 1
      %p132 = scmp.ne.s32.totalorder %s127, %s129
      %p133 = scmp.eq.s32.totalorder %s20, 0
      %p134 = por %p132, %p133
      %p135 = scmp.ne.s32.totalorder %s127, %s129
      %p136 = scmp.eq.s32.totalorder %s25, 1
      %p137 = por %p135, %p136
      %p138 = scmp.ne.s32.totalorder %s129, %s130
      %p139 = scmp.eq.s32.totalorder %s25, 0
      %p140 = por %p138, %p139
      %p141 = scmp.ne.s32.totalorder %s129, %s130
      %p142 = scmp.eq.s32.totalorder %s26, 1
      %p143 = por %p141, %p142
      %p145 = scmp.ne.s32.totalorder %s130, %s144
      %p146 = scmp.eq.s32.totalorder %s26, 0
      %p147 = por %p145, %p146
      %s149 = sadd.s32 %s148, 1
      %p152 = scmp.eq.s32.totalorder %s20, 1
      %p153 = scmp.ne.s32.totalorder %s148, %s150
      %p154 = scmp.eq.s32.totalorder %s20, 0
      %p155 = por %p153, %p154
      %p156 = scmp.ne.s32.totalorder %s148, %s150
      %p157 = scmp.eq.s32.totalorder %s25, 1
      %p158 = por %p156, %p157
      %p159 = scmp.ne.s32.totalorder %s150, %s151
      %p160 = scmp.eq.s32.totalorder %s25, 0
      %p161 = por %p159, %p160
      %p162 = scmp.ne.s32.totalorder %s150, %s151
      %p163 = scmp.eq.s32.totalorder %s26, 1
      %p164 = por %p162, %p163
      %p166 = scmp.ne.s32.totalorder %s151, %s165
      %p167 = scmp.eq.s32.totalorder %s26, 0
      %p168 = por %p166, %p167
      %s170 = sadd.s32 %s169, 1
      %p173 = scmp.eq.s32.totalorder %s20, 1
      %p174 = scmp.ne.s32.totalorder %s169, %s171
      %p175 = scmp.eq.s32.totalorder %s20, 0
      %p176 = por %p174, %p175
      %p177 = scmp.ne.s32.totalorder %s169, %s171
      %p178 = scmp.eq.s32.totalorder %s25, 1
      %p179 = por %p177, %p178
      %p180 = scmp.ne.s32.totalorder %s171, %s172
      %p181 = scmp.eq.s32.totalorder %s25, 0
      %p182 = por %p180, %p181
      %p183 = scmp.ne.s32.totalorder %s171, %s172
      %p184 = scmp.eq.s32.totalorder %s26, 1
      %p185 = por %p183, %p184
      %p187 = scmp.ne.s32.totalorder %s172, %s186
      %p188 = scmp.eq.s32.totalorder %s26, 0
      %p189 = por %p187, %p188
      %s191 = sadd.s32 %s190, 1
      %p194 = scmp.eq.s32.totalorder %s20, 1
      %p195 = scmp.ne.s32.totalorder %s190, %s192
      %p196 = scmp.eq.s32.totalorder %s20, 0
      %p197 = por %p195, %p196
      %p198 = scmp.ne.s32.totalorder %s190, %s192
      %p199 = scmp.eq.s32.totalorder %s25, 1
      %p200 = por %p198, %p199
      %p201 = scmp.ne.s32.totalorder %s192, %s193
      %p202 = scmp.eq.s32.totalorder %s25, 0
      %p203 = por %p201, %p202
      %p204 = scmp.ne.s32.totalorder %s192, %s193
      %p205 = scmp.eq.s32.totalorder %s26, 1
      %p206 = por %p204, %p205
      %p208 = scmp.ne.s32.totalorder %s193, %s207
      %p209 = scmp.eq.s32.totalorder %s26, 0
      %p210 = por %p208, %p209
      %s212 = sadd.s32 %s211, 1
      %p215 = scmp.eq.s32.totalorder %s20, 1
      %p216 = scmp.ne.s32.totalorder %s211, %s213
      %p217 = scmp.eq.s32.totalorder %s20, 0
      %p218 = por %p216, %p217
      %p219 = scmp.ne.s32.totalorder %s211, %s213
      %p220 = scmp.eq.s32.totalorder %s25, 1
      %p221 = por %p219, %p220
      %p222 = scmp.ne.s32.totalorder %s213, %s214
      %p223 = scmp.eq.s32.totalorder %s25, 0
      %p224 = por %p222, %p223
      %p225 = scmp.ne.s32.totalorder %s213, %s214
      %p226 = scmp.eq.s32.totalorder %s26, 1
      %p227 = por %p225, %p226
      %p229 = scmp.ne.s32.totalorder %s214, %s228
      %p230 = scmp.eq.s32.totalorder %s26, 0
      %p231 = por %p229, %p230
      %s233 = sadd.s32 %s232, 1
      %p236 = scmp.eq.s32.totalorder %s20, 1
      %p237 = scmp.ne.s32.totalorder %s232, %s234
      %p238 = scmp.eq.s32.totalorder %s20, 0
      %p239 = por %p237, %p238
      %p240 = scmp.ne.s32.totalorder %s232, %s234
      %p241 = scmp.eq.s32.totalorder %s25, 1
      %p242 = por %p240, %p241
      %p243 = scmp.ne.s32.totalorder %s234, %s235
      %p244 = scmp.eq.s32.totalorder %s25, 0
      %p245 = por %p243, %p244
      %p246 = scmp.ne.s32.totalorder %s234, %s235
      %p247 = scmp.eq.s32.totalorder %s26, 1
      %p248 = por %p246, %p247
      %p250 = scmp.ne.s32.totalorder %s235, %s249
      %p251 = scmp.eq.s32.totalorder %s26, 0
      %p252 = por %p250, %p251
      %s254 = sadd.s32 %s253, 1
      %p257 = scmp.eq.s32.totalorder %s20, 1
      %p258 = scmp.ne.s32.totalorder %s253, %s255
      %p259 = scmp.eq.s32.totalorder %s20, 0
      %p260 = por %p258, %p259
      %p261 = scmp.ne.s32.totalorder %s253, %s255
      %p262 = scmp.eq.s32.totalorder %s25, 1
      %p263 = por %p261, %p262
      %p264 = scmp.ne.s32.totalorder %s255, %s256
      %p265 = scmp.eq.s32.totalorder %s25, 0
      %p266 = por %p264, %p265
      %p267 = scmp.ne.s32.totalorder %s255, %s256
      %p268 = scmp.eq.s32.totalorder %s26, 1
      %p269 = por %p267, %p268
      %p271 = scmp.ne.s32.totalorder %s256, %s270
      %p272 = scmp.eq.s32.totalorder %s26, 0
      %p273 = por %p271, %p272
      %s275 = sadd.s32 %s274, 1
      %p278 = scmp.eq.s32.totalorder %s20, 1
      %p279 = scmp.ne.s32.totalorder %s274, %s276
      %p280 = scmp.eq.s32.totalorder %s20, 0
      %p281 = por %p279, %p280
      %p282 = scmp.ne.s32.totalorder %s274, %s276
      %p283 = scmp.eq.s32.totalorder %s25, 1
      %p284 = por %p282, %p283
      %p285 = scmp.ne.s32.totalorder %s276, %s277
      %p286 = scmp.eq.s32.totalorder %s25, 0
      %p287 = por %p285, %p286
      %p288 = scmp.ne.s32.totalorder %s276, %s277
      %p289 = scmp.eq.s32.totalorder %s26, 1
      %p290 = por %p288, %p289
      %p292 = scmp.ne.s32.totalorder %s277, %s291
      %p293 = scmp.eq.s32.totalorder %s26, 0
      %p294 = por %p292, %p293
      %s296 = sadd.s32 %s295, 1
      %p299 = scmp.eq.s32.totalorder %s20, 1
      %p300 = scmp.ne.s32.totalorder %s295, %s297
      %p301 = scmp.eq.s32.totalorder %s20, 0
      %p302 = por %p300, %p301
      %p303 = scmp.ne.s32.totalorder %s295, %s297
      %p304 = scmp.eq.s32.totalorder %s25, 1
      %p305 = por %p303, %p304
      %p306 = scmp.ne.s32.totalorder %s297, %s298
      %p307 = scmp.eq.s32.totalorder %s25, 0
      %p308 = por %p306, %p307
      %p309 = scmp.ne.s32.totalorder %s297, %s298
      %p310 = scmp.eq.s32.totalorder %s26, 1
      %p311 = por %p309, %p310
      %p313 = scmp.ne.s32.totalorder %s298, %s312
      %p314 = scmp.eq.s32.totalorder %s26, 0
      %p315 = por %p313, %p314
      %s317 = sadd.s32 %s316, 1
      %p320 = scmp.eq.s32.totalorder %s20, 1
      %p321 = scmp.ne.s32.totalorder %s316, %s318
      %p322 = scmp.eq.s32.totalorder %s20, 0
      %p323 = por %p321, %p322
      %p324 = scmp.ne.s32.totalorder %s316, %s318
      %p325 = scmp.eq.s32.totalorder %s25, 1
      %p326 = por %p324, %p325
      %p327 = scmp.ne.s32.totalorder %s318, %s319
      %p328 = scmp.eq.s32.totalorder %s25, 0
      %p329 = por %p327, %p328
      %p330 = scmp.ne.s32.totalorder %s318, %s319
      %p331 = scmp.eq.s32.totalorder %s26, 1
      %p332 = por %p330, %p331
      %p334 = scmp.ne.s32.totalorder %s319, %s333
      %p335 = scmp.eq.s32.totalorder %s26, 0
      %p336 = por %p334, %p335
      %s337 = ssub.s32 %s20, %s27
      %p338 = scmp.eq.s32.totalorder %s337, 0
      %s340 = sadd.s32 %s339, 1
      %s341 = scalar_select %p338, %s339, %s340
      %p344 = pneg %p338
      %p345 = scmp.eq.s32.totalorder %s20, 1
      %p346 = por %p344, %p345
      %p347 = scmp.ne.s32.totalorder %s339, %s342
      %p348 = scmp.eq.s32.totalorder %s20, 0
      %p349 = por %p347, %p348
      %p350 = scmp.ne.s32.totalorder %s339, %s342
      %p351 = scmp.eq.s32.totalorder %s25, 1
      %p352 = por %p350, %p351
      %p353 = scmp.ne.s32.totalorder %s342, %s343
      %p354 = scmp.eq.s32.totalorder %s25, 0
      %p355 = por %p353, %p354
      %p356 = scmp.ne.s32.totalorder %s342, %s343
      %p357 = scmp.eq.s32.totalorder %s26, 1
      %p358 = por %p356, %p357
      %p360 = scmp.ne.s32.totalorder %s343, %s359
      %p361 = scmp.eq.s32.totalorder %s26, 0
      %p362 = por %p360, %p361
      %p363 = scmp.le.s32.totalorder 1, %s20
      %p364 = scmp.lt.s32.totalorder %s20, 3
      %p365 = pnand %p363, %p364
      %p366 = pneg %p365
      // Predicated region
      $region9: #{outconv_forward.1} parent=5 // pred_check
        _
      $region10: #{outconv_forward.1} parent=5 // pred_check_branch
        %368 = sbr.rel (%p365) target = $region12
      $region11: #{outconv_forward.1} parent=5 // pred_region
        %s369 = ssub.s32 %s20, 1
        // Predicated region
        $region13: #{outconv_forward.1} parent=11 // pred_check
          %p370 = pneg %p119
        $region14: #{outconv_forward.1} parent=11 // pred_check_branch
          %372 = sbr.rel (%p370) target = $region16
        $region15: #{outconv_forward.1} parent=11 // pred_region
          _
        $region16: #{outconv_forward.1} parent=11 // pred_fallthru
          _
        // Predicated region
        $region17: #{outconv_forward.1} parent=11 // pred_check
          %p373 = pneg %p140
        $region18: #{outconv_forward.1} parent=11 // pred_check_branch
          %375 = sbr.rel (%p373) target = $region20
        $region19: #{outconv_forward.1} parent=11 // pred_region
          _
        $region20: #{outconv_forward.1} parent=11 // pred_fallthru
          _
        // Predicated region
        $region21: #{outconv_forward.1} parent=11 // pred_check
          %p376 = pneg %p161
        $region22: #{outconv_forward.1} parent=11 // pred_check_branch
          %378 = sbr.rel (%p376) target = $region24
        $region23: #{outconv_forward.1} parent=11 // pred_region
          _
        $region24: #{outconv_forward.1} parent=11 // pred_fallthru
          _
        // Predicated region
        $region25: #{outconv_forward.1} parent=11 // pred_check
          %p379 = pneg %p182
        $region26: #{outconv_forward.1} parent=11 // pred_check_branch
          %381 = sbr.rel (%p379) target = $region28
        $region27: #{outconv_forward.1} parent=11 // pred_region
          _
        $region28: #{outconv_forward.1} parent=11 // pred_fallthru
          _
        // Predicated region
        $region29: #{outconv_forward.1} parent=11 // pred_check
          %p382 = pneg %p203
        $region30: #{outconv_forward.1} parent=11 // pred_check_branch
          %384 = sbr.rel (%p382) target = $region32
        $region31: #{outconv_forward.1} parent=11 // pred_region
          _
        $region32: #{outconv_forward.1} parent=11 // pred_fallthru
          _
        // Predicated region
        $region33: #{outconv_forward.1} parent=11 // pred_check
          %p385 = pneg %p224
        $region34: #{outconv_forward.1} parent=11 // pred_check_branch
          %387 = sbr.rel (%p385) target = $region36
        $region35: #{outconv_forward.1} parent=11 // pred_region
          _
        $region36: #{outconv_forward.1} parent=11 // pred_fallthru
          _
        // Predicated region
        $region37: #{outconv_forward.1} parent=11 // pred_check
          %p388 = pneg %p245
        $region38: #{outconv_forward.1} parent=11 // pred_check_branch
          %390 = sbr.rel (%p388) target = $region40
        $region39: #{outconv_forward.1} parent=11 // pred_region
          _
        $region40: #{outconv_forward.1} parent=11 // pred_fallthru
          _
        // Predicated region
        $region41: #{outconv_forward.1} parent=11 // pred_check
          %p391 = pneg %p266
        $region42: #{outconv_forward.1} parent=11 // pred_check_branch
          %393 = sbr.rel (%p391) target = $region44
        $region43: #{outconv_forward.1} parent=11 // pred_region
          _
        $region44: #{outconv_forward.1} parent=11 // pred_fallthru
          _
        // Predicated region
        $region45: #{outconv_forward.1} parent=11 // pred_check
          %p394 = pneg %p287
        $region46: #{outconv_forward.1} parent=11 // pred_check_branch
          %396 = sbr.rel (%p394) target = $region48
        $region47: #{outconv_forward.1} parent=11 // pred_region
          _
        $region48: #{outconv_forward.1} parent=11 // pred_fallthru
          _
        // Predicated region
        $region49: #{outconv_forward.1} parent=11 // pred_check
          %p397 = pneg %p308
        $region50: #{outconv_forward.1} parent=11 // pred_check_branch
          %399 = sbr.rel (%p397) target = $region52
        $region51: #{outconv_forward.1} parent=11 // pred_region
          _
        $region52: #{outconv_forward.1} parent=11 // pred_fallthru
          _
        // Predicated region
        $region53: #{outconv_forward.1} parent=11 // pred_check
          %p400 = pneg %p329
        $region54: #{outconv_forward.1} parent=11 // pred_check_branch
          %402 = sbr.rel (%p400) target = $region56
        $region55: #{outconv_forward.1} parent=11 // pred_region
          _
        $region56: #{outconv_forward.1} parent=11 // pred_fallthru
          _
      $region12: #{outconv_forward.1} parent=5 // pred_fallthru
        _
      %p403 = scmp.lt.s32.totalorder %s20, 2
      // Predicated region
      $region57: #{outconv_forward.1} parent=5 // pred_check
        %p404 = pneg %p403
      $region58: #{outconv_forward.1} parent=5 // pred_check_branch
        %406 = sbr.rel (%p404) target = $region60
      $region59: #{outconv_forward.1} parent=5 // pred_region
        // Predicated region
        $region61: #{outconv_forward.1} parent=59 // pred_check
          %p407 = pneg %p40
        $region62: #{outconv_forward.1} parent=59 // pred_check_branch
          %409 = sbr.rel (%p407) target = $region64
        $region63: #{outconv_forward.1} parent=59 // pred_region
          %s410 = sand.u32 %s30, 1
          %s411 = sand.u32 %s30, 1
          %s412 = smul.addr %s411, 48
          %s413 = scalar_lea.vmem [#allocation2], %s412
          %s414 = smul.u32 2, %s20
          %s415 = smul.addr %s414, 8
          %s416 = scalar_lea.vmem %s0, %s415
          // Predicated region
          $region65: #{outconv_forward.1} parent=63 // pred_check
            _
          $region66: #{outconv_forward.1} parent=63 // pred_check_branch
            %418 = sbr.rel (0) target = $region68
          $region67: #{outconv_forward.1} parent=63 // pred_region
            // Predicated region
            $region69: #{outconv_forward.1} parent=67 // pred_check
              _
            $region70: #{outconv_forward.1} parent=67 // pred_check_branch
              %420 = sbr.rel (0) target = $region72
            $region71: #{outconv_forward.1} parent=67 // pred_region
              loop: start=0, step=1, limit=1
              $region73: #{outconv_forward.1} parent=71 // loop_pre_header
                _
              $region74: #{outconv_forward.1} parent=71 // loop_header
                %s422 = sphi 0, %s426
                %p423 = scmp.ge.s32.totalorder %s422, 1
                %s427 = sphi %s416, %s416
                %s428 = sphi %s413, %s413
              $region75: #{outconv_forward.1} parent=71 // loop_header_branch
                %425 = sbr.rel (%p423) target = $region79
              $region76: #{outconv_forward.1} parent=71 // loop_body
                %v429 = vld [vmem:[%s427] sm:$0xff]
                %430 = vst [vmem:[%s428] sm:$0xff] %v429
                %v431 = vld [vmem:[%s427 + $0x8] sm:$0xff]
                %432 = vst [vmem:[%s428 + $0x8] sm:$0xff] %v431
                %v433 = vld [vmem:[%s427 + $0x20] sm:$0xff]
                %434 = vst [vmem:[%s428 + $0x10] sm:$0xff] %v433
                %v435 = vld [vmem:[%s427 + $0x28] sm:$0xff]
                %436 = vst [vmem:[%s428 + $0x18] sm:$0xff] %v435
                %v437 = vld [vmem:[%s427 + $0x40] sm:$0xff]
                %438 = vst [vmem:[%s428 + $0x20] sm:$0xff] %v437
                %v439 = vld [vmem:[%s427 + $0x48] sm:$0xff]
                %440 = vst [vmem:[%s428 + $0x28] sm:$0xff] %v439
              $region77: #{outconv_forward.1} parent=71 // loop_footer
                %s426 = sadd.s32 1, %s422
              $region78: #{outconv_forward.1} parent=71 // loop_footer_branch
                %421 = sbr.rel target = $region74
              $region79: #{outconv_forward.1} parent=71 // loop_exit
                _
            $region72: #{outconv_forward.1} parent=67 // pred_fallthru
              _
            // Predicated region
            $region80: #{outconv_forward.1} parent=67 // pred_check
              _
            $region81: #{outconv_forward.1} parent=67 // pred_check_branch
              %442 = sbr.rel target = $region83
            $region82: #{outconv_forward.1} parent=67 // pred_region
              _
            $region83: #{outconv_forward.1} parent=67 // pred_fallthru
              _
          $region68: #{outconv_forward.1} parent=63 // pred_fallthru
            _
          %443 = vnop
        $region64: #{outconv_forward.1} parent=59 // pred_fallthru
          _
        // Predicated region
        $region84: #{outconv_forward.1} parent=59 // pred_check
          %p444 = pneg %p66
        $region85: #{outconv_forward.1} parent=59 // pred_check_branch
          %446 = sbr.rel (%p444) target = $region87
        $region86: #{outconv_forward.1} parent=59 // pred_region
          %p447 = scmp.lt.s32.totalorder %s20, 1
          %s448 = scalar_select %p447, %s20, 1
          %s449 = smul.addr %s448, 2
          %s450 = smul.addr %s449, 8
          %s451 = scalar_lea.vmem %s1, %s450
        $region87: #{outconv_forward.1} parent=59 // pred_fallthru
          _
        // Predicated region
        $region88: #{outconv_forward.1} parent=59 // pred_check
          %p452 = pneg %p92
        $region89: #{outconv_forward.1} parent=59 // pred_check_branch
          %454 = sbr.rel (%p452) target = $region91
        $region90: #{outconv_forward.1} parent=59 // pred_region
          %p455 = scmp.lt.s32.totalorder %s20, 1
          %s456 = scalar_select %p455, %s20, 1
          %s457 = smul.addr %s456, 2
          %s458 = smul.addr %s457, 8
          %s459 = scalar_lea.vmem %s2, %s458
        $region91: #{outconv_forward.1} parent=59 // pred_fallthru
          _
      $region60: #{outconv_forward.1} parent=5 // pred_fallthru
        _
      %p460 = scmp.le.s32.totalorder 1, %s20
      %p461 = scmp.lt.s32.totalorder %s20, 3
      %p462 = pnand %p460, %p461
      %p463 = pneg %p462
      // Predicated region
      $region92: #{outconv_forward.1} parent=5 // pred_check
        _
      $region93: #{outconv_forward.1} parent=5 // pred_check_branch
        %465 = sbr.rel (%p462) target = $region95
      $region94: #{outconv_forward.1} parent=5 // pred_region
        %s466 = ssub.s32 %s20, 1
        %s467 = sand.u32 %s33, 1
        %s468 = sand.u32 %s33, 1
        %s469 = smul.addr %s468, 48
        %s470 = scalar_lea.vmem [#allocation2], %s469
        // Predicated region
        $region96: #{outconv_forward.1} parent=94 // pred_check
          %p471 = pneg %p46
        $region97: #{outconv_forward.1} parent=94 // pred_check_branch
          %473 = sbr.rel (%p471) target = $region99
        $region98: #{outconv_forward.1} parent=94 // pred_region
          _
        $region99: #{outconv_forward.1} parent=94 // pred_fallthru
          _
        %s474 = sand.u32 %s33, 1
        %s475 = sand.u32 %s33, 1
        %s476 = smul.addr %s475, 48
        %s477 = scalar_lea.vmem [#allocation2], %s476
        %p478 = pneg %p46
        %p479 = pneg %p43
        %p480 = scmp.lt.s32.totalorder %s25, 1
        %s481 = scalar_select %p480, %s25, 1
        %s482 = smul.addr %s481, 2
        %s483 = smul.addr %s482, 8
        %s484 = scalar_lea.vmem %s1, %s483
        %p485 = pneg %p72
        %p486 = pneg %p69
        %p487 = scmp.lt.s32.totalorder %s25, 1
        %s488 = scalar_select %p487, %s25, 1
        %s489 = smul.addr %s488, 2
        %s490 = smul.addr %s489, 8
        %s491 = scalar_lea.vmem %s2, %s490
        %p492 = pneg %p98
        %p493 = pneg %p95
        %p494 = pneg %p119
        %p495 = pneg %p116
        %p496 = pneg %p140
        %p497 = pneg %p137
        %p498 = pneg %p161
        %p499 = pneg %p158
        %p500 = pneg %p182
        %p501 = pneg %p179
        %p502 = pneg %p203
        %p503 = pneg %p200
        %p504 = pneg %p224
        %p505 = pneg %p221
        %p506 = pneg %p245
        %p507 = pneg %p242
        %p508 = pneg %p266
        %p509 = pneg %p263
        %p510 = pneg %p287
        %p511 = pneg %p284
        %p512 = pneg %p308
        %p513 = pneg %p305
        %p514 = pneg %p329
        %p515 = pneg %p326
        %p516 = pneg %p355
        %p517 = pneg %p352
        %p518 = scmp.lt.s32.totalorder %s25, 1
        %s519 = scalar_select %p518, %s25, 1
        %s520 = smul.addr %s519, 2
        %s521 = smul.addr %s520, 4
        %s522 = scalar_lea.vmem %s14, %s521
        %s523 = smul.u32 2, %s25
        %p524 = scmp.lt.s32.totalorder %s25, 1
        %s525 = scalar_select %p524, %s25, 1
        %s526 = smul.addr %s525, 2
        %s527 = smul.addr %s526, 8
        %s528 = scalar_lea.vmem %s1, %s527
        %p529 = scmp.lt.s32.totalorder %s25, 1
        %s530 = scalar_select %p529, %s25, 1
        %s531 = smul.addr %s530, 2
        %s532 = smul.addr %s531, 8
        %s533 = scalar_lea.vmem %s2, %s532
        %p534 = scmp.lt.s32.totalorder %s25, 1
        %s535 = scalar_select %p534, %s25, 1
        %s536 = smul.addr %s535, 2
        %s537 = smul.addr %s536, 4
        %s538 = scalar_lea.vmem %s14, %s537
        %v540 = vld [vmem:[%s470] sm:$0xff]
        %v541 = vld [vmem:[%s470 + $0x8] sm:$0xff]
        %v542 = vld [vmem:[%s470 + $0x10] sm:$0xff]
        %v543 = vld [vmem:[%s470 + $0x18] sm:$0xff]
        %v544 = vld [vmem:[%s470 + $0x20] sm:$0xff]
        %v545 = vld [vmem:[%s470 + $0x28] sm:$0xff]
        %v546 = vld [vmem:[%s3] sm:$0xff]
        %v547 = vld [vmem:[%s3 + $0x8] sm:$0xff]
        %v548 = vld [vmem:[%s3 + $0x10] sm:$0x1]
        %v549 = vld [vmem:[%s3 + $0x18] sm:$0x1]
        %v550 = vld [vmem:[%s4] sm:$0xff]
        %v551 = vld [vmem:[%s4 + $0x8] sm:$0xff]
        %552 = vrot.lane.b32.xlu0 %v540, 17
        %v553 = vpop.permute.xlu0 %552
        %554 = vrot.lane.b32.xlu0 %v542, 17
        %v555 = vpop.permute.xlu0 %554
        %556 = vrot.lane.b32.xlu0 %v544, 17
        %v557 = vpop.permute.xlu0 %556
        %558 = vrot.lane.b32.xlu0 %v541, 17
        %v559 = vpop.permute.xlu0 %558
        %560 = vrot.lane.b32.xlu0 %v543, 17
        %v561 = vpop.permute.xlu0 %560
        %562 = vrot.lane.b32.xlu0 %v545, 17
        %v563 = vpop.permute.xlu0 %562
        %v564 = vlaneseq
        %v565 = vand.u32 %v564, 127
        %vm566 = vcmp.lt.s32.totalorder %v565, 17
        %v567 = vsel %vm566, %v553, %v559
        %v568 = vsel %vm566, %v555, %v561
        %v569 = vsel %vm566, %v557, %v563
        %v570 = vsel %vm566, %v559, %v553
        %v571 = vsel %vm566, %v561, %v555
        %v572 = vsel %vm566, %v563, %v557
        %v573 = vlaneseq
        %v574 = vshrl.u32 %v573, 7
        %v575 = vsub.s32 0, %v574
        %v576 = vrot.slane %v546, %v575
        %v577 = vlaneseq
        %v578 = vshrl.u32 %v577, 7
        %v579 = vsub.s32 0, %v578
        %v580 = vrot.slane %v547, %v579
        %v581 = vmul.f32 %v570, %v576
        %v582 = vmul.f32 %v567, %v580
        %v583 = vmul.f32 %v571, %v576
        %v584 = vmul.f32 %v568, %v580
        %v585 = vmul.f32 %v572, %v576
        %v586 = vmul.f32 %v569, %v580
        %587 = vrot.lane.b32.xlu0 %v540, 16
        %v588 = vpop.permute.xlu0 %587
        %589 = vrot.lane.b32.xlu0 %v542, 16
        %v590 = vpop.permute.xlu0 %589
        %591 = vrot.lane.b32.xlu0 %v544, 16
        %v592 = vpop.permute.xlu0 %591
        %593 = vrot.lane.b32.xlu0 %v541, 16
        %v594 = vpop.permute.xlu0 %593
        %595 = vrot.lane.b32.xlu0 %v543, 16
        %v596 = vpop.permute.xlu0 %595
        %597 = vrot.lane.b32.xlu0 %v545, 16
        %v598 = vpop.permute.xlu0 %597
        %vm599 = vcmp.lt.s32.totalorder %v565, 16
        %v600 = vsel %vm599, %v588, %v594
        %v601 = vsel %vm599, %v590, %v596
        %v602 = vsel %vm599, %v592, %v598
        %v603 = vsel %vm599, %v594, %v588
        %v604 = vsel %vm599, %v596, %v590
        %v605 = vsel %vm599, %v598, %v592
        %v606 = vlaneseq
        %v607 = vshrl.u32 %v606, 7
        %v608 = vsub.s32 1, %v607
        %v609 = vrot.slane %v546, %v608
        %v610 = vlaneseq
        %v611 = vshrl.u32 %v610, 7
        %v612 = vsub.s32 1, %v611
        %v613 = vrot.slane %v547, %v612
        %v614 = vmul.f32 %v603, %v609
        %v615 = vmul.f32 %v600, %v613
        %v616 = vmul.f32 %v604, %v609
        %v617 = vmul.f32 %v601, %v613
        %v618 = vmul.f32 %v605, %v609
        %v619 = vmul.f32 %v602, %v613
        %620 = vrot.lane.b32.xlu0 %v540, 15
        %v621 = vpop.permute.xlu0 %620
        %622 = vrot.lane.b32.xlu0 %v542, 15
        %v623 = vpop.permute.xlu0 %622
        %624 = vrot.lane.b32.xlu0 %v544, 15
        %v625 = vpop.permute.xlu0 %624
        %626 = vrot.lane.b32.xlu0 %v541, 15
        %v627 = vpop.permute.xlu0 %626
        %628 = vrot.lane.b32.xlu0 %v543, 15
        %v629 = vpop.permute.xlu0 %628
        %630 = vrot.lane.b32.xlu0 %v545, 15
        %v631 = vpop.permute.xlu0 %630
        %vm632 = vcmp.lt.s32.totalorder %v565, 15
        %v633 = vsel %vm632, %v621, %v627
        %v634 = vsel %vm632, %v623, %v629
        %v635 = vsel %vm632, %v625, %v631
        %v636 = vsel %vm632, %v627, %v621
        %v637 = vsel %vm632, %v629, %v623
        %v638 = vsel %vm632, %v631, %v625
        %v639 = vlaneseq
        %v640 = vshrl.u32 %v639, 7
        %v641 = vsub.s32 2, %v640
        %v642 = vrot.slane %v546, %v641
        %v643 = vlaneseq
        %v644 = vshrl.u32 %v643, 7
        %v645 = vsub.s32 2, %v644
        %v646 = vrot.slane %v547, %v645
        %v647 = vmul.f32 %v636, %v642
        %v648 = vmul.f32 %v633, %v646
        %v649 = vmul.f32 %v637, %v642
        %v650 = vmul.f32 %v634, %v646
        %v651 = vmul.f32 %v638, %v642
        %v652 = vmul.f32 %v635, %v646
        %653 = vrot.lane.b32.xlu0 %v540, 1
        %v654 = vpop.permute.xlu0 %653
        %655 = vrot.lane.b32.xlu0 %v542, 1
        %v656 = vpop.permute.xlu0 %655
        %657 = vrot.lane.b32.xlu0 %v544, 1
        %v658 = vpop.permute.xlu0 %657
        %659 = vrot.lane.b32.xlu0 %v541, 1
        %v660 = vpop.permute.xlu0 %659
        %661 = vrot.lane.b32.xlu0 %v543, 1
        %v662 = vpop.permute.xlu0 %661
        %663 = vrot.lane.b32.xlu0 %v545, 1
        %v664 = vpop.permute.xlu0 %663
        %vm665 = vcmp.lt.s32.totalorder %v565, 1
        %v666 = vsel %vm665, %v654, %v660
        %v667 = vsel %vm665, %v656, %v662
        %v668 = vsel %vm665, %v658, %v664
        %v669 = vsel %vm665, %v660, %v654
        %v670 = vsel %vm665, %v662, %v656
        %v671 = vsel %vm665, %v664, %v658
        %v672 = vlaneseq
        %v673 = vshrl.u32 %v672, 7
        %v674 = vsub.s32 3, %v673
        %v675 = vrot.slane %v546, %v674
        %v676 = vlaneseq
        %v677 = vshrl.u32 %v676, 7
        %v678 = vsub.s32 3, %v677
        %v679 = vrot.slane %v547, %v678
        %v680 = vmul.f32 %v669, %v675
        %v681 = vmul.f32 %v666, %v679
        %v682 = vmul.f32 %v670, %v675
        %v683 = vmul.f32 %v667, %v679
        %v684 = vmul.f32 %v671, %v675
        %v685 = vmul.f32 %v668, %v679
        %686 = vrot.lane.b32.xlu0 %v540, 127
        %v687 = vpop.permute.xlu0 %686
        %688 = vrot.lane.b32.xlu0 %v542, 127
        %v689 = vpop.permute.xlu0 %688
        %690 = vrot.lane.b32.xlu0 %v544, 127
        %v691 = vpop.permute.xlu0 %690
        %692 = vrot.lane.b32.xlu0 %v541, 127
        %v693 = vpop.permute.xlu0 %692
        %694 = vrot.lane.b32.xlu0 %v543, 127
        %v695 = vpop.permute.xlu0 %694
        %696 = vrot.lane.b32.xlu0 %v545, 127
        %v697 = vpop.permute.xlu0 %696
        %vm698 = vcmp.lt.s32.totalorder %v565, 127
        %v699 = vsel %vm698, %v687, %v693
        %v700 = vsel %vm698, %v689, %v695
        %v701 = vsel %vm698, %v691, %v697
        %v702 = vsel %vm698, %v693, %v687
        %v703 = vsel %vm698, %v695, %v689
        %v704 = vsel %vm698, %v697, %v691
        %v705 = vlaneseq
        %v706 = vshrl.u32 %v705, 7
        %v707 = vsub.s32 5, %v706
        %v708 = vrot.slane %v546, %v707
        %v709 = vlaneseq
        %v710 = vshrl.u32 %v709, 7
        %v711 = vsub.s32 5, %v710
        %v712 = vrot.slane %v547, %v711
        %v713 = vmul.f32 %v699, %v708
        %v714 = vmul.f32 %v702, %v712
        %v715 = vmul.f32 %v700, %v708
        %v716 = vmul.f32 %v703, %v712
        %v717 = vmul.f32 %v701, %v708
        %v718 = vmul.f32 %v704, %v712
        %719 = vrot.lane.b32.xlu0 %v540, 113
        %v720 = vpop.permute.xlu0 %719
        %721 = vrot.lane.b32.xlu0 %v542, 113
        %v722 = vpop.permute.xlu0 %721
        %723 = vrot.lane.b32.xlu0 %v544, 113
        %v724 = vpop.permute.xlu0 %723
        %725 = vrot.lane.b32.xlu0 %v541, 113
        %v726 = vpop.permute.xlu0 %725
        %727 = vrot.lane.b32.xlu0 %v543, 113
        %v728 = vpop.permute.xlu0 %727
        %729 = vrot.lane.b32.xlu0 %v545, 113
        %v730 = vpop.permute.xlu0 %729
        %vm731 = vcmp.lt.s32.totalorder %v565, 113
        %v732 = vsel %vm731, %v720, %v726
        %v733 = vsel %vm731, %v722, %v728
        %v734 = vsel %vm731, %v724, %v730
        %v735 = vsel %vm731, %v726, %v720
        %v736 = vsel %vm731, %v728, %v722
        %v737 = vsel %vm731, %v730, %v724
        %v738 = vlaneseq
        %v739 = vshrl.u32 %v738, 7
        %v740 = vsub.s32 6, %v739
        %v741 = vrot.slane %v546, %v740
        %v742 = vlaneseq
        %v743 = vshrl.u32 %v742, 7
        %v744 = vsub.s32 6, %v743
        %v745 = vrot.slane %v547, %v744
        %v746 = vmul.f32 %v732, %v741
        %v747 = vmul.f32 %v735, %v745
        %v748 = vmul.f32 %v733, %v741
        %v749 = vmul.f32 %v736, %v745
        %v750 = vmul.f32 %v734, %v741
        %v751 = vmul.f32 %v737, %v745
        %752 = vrot.lane.b32.xlu0 %v540, 112
        %v753 = vpop.permute.xlu0 %752
        %754 = vrot.lane.b32.xlu0 %v542, 112
        %v755 = vpop.permute.xlu0 %754
        %756 = vrot.lane.b32.xlu0 %v544, 112
        %v757 = vpop.permute.xlu0 %756
        %758 = vrot.lane.b32.xlu0 %v541, 112
        %v759 = vpop.permute.xlu0 %758
        %760 = vrot.lane.b32.xlu0 %v543, 112
        %v761 = vpop.permute.xlu0 %760
        %762 = vrot.lane.b32.xlu0 %v545, 112
        %v763 = vpop.permute.xlu0 %762
        %vm764 = vcmp.lt.s32.totalorder %v565, 112
        %v765 = vsel %vm764, %v753, %v759
        %v766 = vsel %vm764, %v755, %v761
        %v767 = vsel %vm764, %v757, %v763
        %v768 = vsel %vm764, %v759, %v753
        %v769 = vsel %vm764, %v761, %v755
        %v770 = vsel %vm764, %v763, %v757
        %v771 = vlaneseq
        %v772 = vshrl.u32 %v771, 7
        %v773 = vsub.s32 7, %v772
        %v774 = vrot.slane %v546, %v773
        %v775 = vlaneseq
        %v776 = vshrl.u32 %v775, 7
        %v777 = vsub.s32 7, %v776
        %v778 = vrot.slane %v547, %v777
        %v779 = vmul.f32 %v765, %v774
        %v780 = vmul.f32 %v768, %v778
        %v781 = vmul.f32 %v766, %v774
        %v782 = vmul.f32 %v769, %v778
        %v783 = vmul.f32 %v767, %v774
        %v784 = vmul.f32 %v770, %v778
        %785 = vrot.lane.b32.xlu0 %v540, 111
        %v786 = vpop.permute.xlu0 %785
        %787 = vrot.lane.b32.xlu0 %v542, 111
        %v788 = vpop.permute.xlu0 %787
        %789 = vrot.lane.b32.xlu0 %v544, 111
        %v790 = vpop.permute.xlu0 %789
        %791 = vrot.lane.b32.xlu0 %v541, 111
        %v792 = vpop.permute.xlu0 %791
        %793 = vrot.lane.b32.xlu0 %v543, 111
        %v794 = vpop.permute.xlu0 %793
        %795 = vrot.lane.b32.xlu0 %v545, 111
        %v796 = vpop.permute.xlu0 %795
        %vm797 = vcmp.lt.s32.totalorder %v565, 111
        %v798 = vsel %vm797, %v786, %v792
        %v799 = vsel %vm797, %v788, %v794
        %v800 = vsel %vm797, %v790, %v796
        %v801 = vsel %vm797, %v792, %v786
        %v802 = vsel %vm797, %v794, %v788
        %v803 = vsel %vm797, %v796, %v790
        %v804 = vlaneseq
        %v805 = vshrl.u32 %v804, 7
        %v806 = vsub.s32 0, %v805
        %v807 = vrot.slane %v548, %v806
        %v808 = vlaneseq
        %v809 = vshrl.u32 %v808, 7
        %v810 = vsub.s32 0, %v809
        %v811 = vrot.slane %v549, %v810
        %v812 = vmul.f32 %v798, %v807
        %v813 = vmul.f32 %v801, %v811
        %v814 = vmul.f32 %v799, %v807
        %v815 = vmul.f32 %v802, %v811
        %v816 = vmul.f32 %v800, %v807
        %v817 = vmul.f32 %v803, %v811
        %v818 = vpack.c.bf16 %v583, %v581
        %v819 = vpack.c.bf16 %v584, %v582
        %v820 = vpack.c.bf16 %v614, %v585
        %v821 = vpack.c.bf16 %v615, %v586
        %v822 = vpack.c.bf16 %v618, %v616
        %v823 = vpack.c.bf16 %v619, %v617
        %v824 = vpack.c.bf16 %v649, %v647
        %v825 = vpack.c.bf16 %v650, %v648
        %v826 = vpack.c.bf16 %v680, %v651
        %v827 = vpack.c.bf16 %v681, %v652
        %v828 = vpack.c.bf16 %v684, %v682
        %v829 = vpack.c.bf16 %v685, %v683
        %v830 = vpack.c.bf16 %v542, %v540
        %v831 = vpack.c.bf16 %v543, %v541
        %v832 = vpack.c.bf16 %v713, %v544
        %v833 = vpack.c.bf16 %v714, %v545
        %v834 = vpack.c.bf16 %v717, %v715
        %v835 = vpack.c.bf16 %v718, %v716
        %v836 = vpack.c.bf16 %v748, %v746
        %v837 = vpack.c.bf16 %v749, %v747
        %v838 = vpack.c.bf16 %v779, %v750
        %v839 = vpack.c.bf16 %v780, %v751
        %v840 = vpack.c.bf16 %v783, %v781
        %v841 = vpack.c.bf16 %v784, %v782
        %v842 = vpack.c.bf16 %v814, %v812
        %v843 = vpack.c.bf16 %v815, %v813
        %v844 = vpack.c.bf16 %v816, %v816
        %v845 = vpack.c.bf16 %v817, %v817
        %v846 = vld [vmem:[%s5] sm:$0xff]
        %v847 = vld [vmem:[%s5 + $0x8] sm:$0xff]
        %v848 = vld [vmem:[%s6] sm:$0xff]
        %v849 = vld [vmem:[%s6 + $0x8] sm:$0xff]
        %851 = vset.pattern.permute.xlu0 0
        %852 = vperm.xlu0 %851, %v848
        %v853 = vpop.permute.xlu0 %852
        %856 = vset.pattern.permute.xlu0 0
        %857 = vperm.xlu0 %856, %v849
        %v858 = vpop.permute.xlu0 %857
        %v862 = vunpack.c.l.b16 %v846
        %v863 = vunpack.c.h.b16 %v846
        %v864 = vunpack.c.l.b16 %v847
        %v865 = vunpack.c.h.b16 %v847
        %v866 = vpack.c.b16 %v864, %v862
        %v867 = vpack.c.b16 %v865, %v863
        %vm869 = vcmask 719872
        %v871 = vsel %vm869, %v867, 0
        %vm873 = vcmask 1043456
        %v875 = vsel %vm873, %v844, 0
        %v878 = vsel %vm873, %v845, 0
        %880 = vmatprep.subr.bf16.mxu0 %v819
        %881 = vmatpush1.bf16.msra.mxu0 %v818
        %882 = vmatprep.subr.bf16.mxu0 %v821
        %883 = vmatpush1.bf16.msra.mxu0 %v820
        %884 = vmatprep.subr.bf16.mxu0 %v823
        %885 = vmatpush1.bf16.msra.mxu0 %v822
        %886 = vmatprep.subr.bf16.mxu0 %v825
        %887 = vmatpush1.bf16.msra.mxu0 %v824
        %888 = vmatprep.subr.bf16.mxu0 %v827
        %889 = vmatpush1.bf16.msra.mxu0 %v826
        %890 = vmatprep.subr.bf16.mxu0 %v829
        %891 = vmatpush1.bf16.msra.mxu0 %v828
        %892 = vmatprep.subr.bf16.mxu0 %v831
        %893 = vmatpush1.bf16.msra.mxu0 %v830
        %894 = vmatprep.subr.bf16.mxu0 %v833
        %895 = vmatpush1.bf16.msra.mxu0 %v832
        %896 = vmatprep.subr.bf16.mxu0 %v835
        %897 = vmatpush1.bf16.msra.mxu0 %v834
        %898 = vmatprep.subr.bf16.mxu0 %v837
        %899 = vmatpush1.bf16.msra.mxu0 %v836
        %900 = vmatprep.subr.bf16.mxu0 %v839
        %901 = vmatpush1.bf16.msra.mxu0 %v838
        %902 = vmatprep.subr.bf16.mxu0 %v841
        %903 = vmatpush1.bf16.msra.mxu0 %v840
        %904 = vmatprep.subr.bf16.mxu0 %v843
        %905 = vmatpush1.bf16.msra.mxu0 %v842
        %906 = vmatprep.subr.bf16.mxu0 %v878
        %907 = vmatpush1.bf16.msra.mxu0 %v875
        %908 = vmatprep.subr.bf16.mxu0 0
        %909 = vmatpush1.bf16.msra.mxu0 0
        %910 = vmatprep.subr.bf16.mxu0 0
        %911 = vmatpush1.bf16.msra.mxu0 0
        %912 = vmatprep.mubr.bf16.mxu0 %v871
        %913 = vmatmul.mubr.bf16.gmra.mrb[0].mxu0 %v866
        %v914 = vpop.f32.mrb[0].mxu0
        %v915 = vadd.f32 %v853, %v914
        %v916 = vpop.f32.mrb[0].mxu0
        %v917 = vadd.f32 %v853, %v916
        %v918 = vpop.f32.mrb[0].mxu0
        %v919 = vadd.f32 %v858, %v918
        %v920 = vpop.f32.mrb[0].mxu0
        %v921 = vadd.f32 %v858, %v920
        %922 = vdwg.mxu0
        %v923 = vadd.f32 %v915, %v917
        %924 = vadd.xlane.f32.xlu0 %v923
        %v925 = vpop.xlane.xlu0 %924
        %v926 = vadd.f32 %v919, %v921
        %927 = vadd.xlane.f32.xlu0 %v926
        %v928 = vpop.xlane.xlu0 %927
        %vm929 = vcmask 130048
        %v931 = vsel %vm929, %v550, 0
        %v934 = vsel %vm929, %v551, 0
        %936 = vmatprep.subr.mxu0 0.0
        %937 = vmatpush1.msra.mxu0 %v925
        %938 = vmatprep.subr.mxu0 0.0
        %939 = vmatpush1.msra.mxu0 %v928
        %940 = vmatprep.subr.mxu0 0.0
        %941 = vmatpush1.msra.mxu0 0.0
        %942 = vmatprep.subr.mxu0 0.0
        %943 = vmatpush1.msra.mxu0 0.0
        %944 = vmatprep.subr.mxu0 0.0
        %945 = vmatpush1.msra.mxu0 0.0
        %946 = vmatprep.subr.mxu0 0.0
        %947 = vmatpush1.msra.mxu0 0.0
        %948 = vmatprep.subr.mxu0 0.0
        %949 = vmatpush1.msra.mxu0 0.0
        %950 = vmatprep.subr.mxu0 0.0
        %951 = vmatpush1.msra.mxu0 0.0
        %952 = vmatprep.subr.mxu0 0.0
        %953 = vmatpush1.msra.mxu0 0.0
        %954 = vmatprep.subr.mxu0 0.0
        %955 = vmatpush1.msra.mxu0 0.0
        %956 = vmatprep.subr.mxu0 0.0
        %957 = vmatpush1.msra.mxu0 0.0
        %958 = vmatprep.subr.mxu0 0.0
        %959 = vmatpush1.msra.mxu0 0.0
        %960 = vmatprep.subr.mxu0 0.0
        %961 = vmatpush1.msra.mxu0 0.0
        %962 = vmatprep.subr.mxu0 0.0
        %963 = vmatpush1.msra.mxu0 0.0
        %964 = vmatprep.subr.mxu0 0.0
        %965 = vmatpush1.msra.mxu0 0.0
        %966 = vmatprep.subr.mxu0 0.0
        %967 = vmatpush1.msra.mxu0 0.0
        %968 = vmatprep.subr.mxu0 0.0
        %969 = vmatpush1.msra.mxu0 0.0
        %970 = vmatprep.subr.mxu0 0.0
        %971 = vmatpush1.msra.mxu0 0.0
        %972 = vmatprep.subr.mxu0 0.0
        %973 = vmatpush1.msra.mxu0 0.0
        %974 = vmatprep.subr.mxu0 0.0
        %975 = vmatpush1.msra.mxu0 0.0
        %976 = vmatprep.subr.mxu0 0.0
        %977 = vmatpush1.msra.mxu0 0.0
        %978 = vmatprep.subr.mxu0 0.0
        %979 = vmatpush1.msra.mxu0 0.0
        %980 = vmatprep.subr.mxu0 0.0
        %981 = vmatpush1.msra.mxu0 0.0
        %982 = vmatprep.subr.mxu0 0.0
        %983 = vmatpush1.msra.mxu0 0.0
        %984 = vmatprep.subr.mxu0 0.0
        %985 = vmatpush1.msra.mxu0 0.0
        %986 = vmatprep.subr.mxu0 0.0
        %987 = vmatpush1.msra.mxu0 0.0
        %988 = vmatprep.subr.mxu0 0.0
        %989 = vmatpush1.msra.mxu0 0.0
        %990 = vmatprep.subr.mxu0 0.0
        %991 = vmatpush1.msra.mxu0 0.0
        %992 = vmatprep.subr.mxu0 0.0
        %993 = vmatpush1.msra.mxu0 0.0
        %994 = vmatprep.subr.mxu0 0.0
        %995 = vmatpush1.msra.mxu0 0.0
        %996 = vmatprep.subr.mxu0 0.0
        %997 = vmatpush1.msra.mxu0 0.0
        %998 = vmatprep.subr.mxu0 0.0
        %999 = vmatpush1.msra.mxu0 0.0
        %1000 = vmatprep.mubr.f32.mxu0 0.0
        %1001 = vmatmul.mubr.f32.gmra.mrb[0].mxu0 %v931
        %v1002 = vpop.f32.mrb[0].mxu0
        %v1003 = vadd.f32 0.0, %v1002
        %v1004 = vpop.f32.mrb[0].mxu0
        %1005 = vmatprep.mubr.f32.mxu0 0.0
        %1006 = vmatmul.mubr.f32.gmra.mrb[0].mxu0 %v934
        %v1007 = vpop.f32.mrb[0].mxu0
        %v1008 = vadd.f32 0.0, %v1007
        %v1009 = vpop.f32.mrb[0].mxu0
        %1010 = vdwg.mxu0
        %1012 = vset.pattern.permute.xlu0 0
        %1013 = vperm.xlu0 %1012, %v1003
        %v1014 = vpop.permute.xlu0 %1013
        %1017 = vset.pattern.permute.xlu0 0
        %1018 = vperm.xlu0 %1017, %v1008
        %v1019 = vpop.permute.xlu0 %1018
        %v1021 = vsub.f32 %v915, %v1014
        %v1022 = vsub.f32 %v917, %v1014
        %v1023 = vsub.f32 %v919, %v1019
        %v1024 = vsub.f32 %v921, %v1019
        %v1025 = vmul.f32 %v1021, %v1021
        %v1026 = vmul.f32 %v1022, %v1022
        %v1027 = vmul.f32 %v1023, %v1023
        %v1028 = vmul.f32 %v1024, %v1024
        %v1029 = vadd.f32 %v1025, %v1026
        %1030 = vadd.xlane.f32.xlu0 %v1029
        %v1031 = vpop.xlane.xlu0 %1030
        %v1032 = vadd.f32 %v1027, %v1028
        %1033 = vadd.xlane.f32.xlu0 %v1032
        %v1034 = vpop.xlane.xlu0 %1033
        %1035 = vmatprep.subr.mxu0 0.0
        %1036 = vmatpush1.msra.mxu0 %v1031
        %1037 = vmatprep.subr.mxu0 0.0
        %1038 = vmatpush1.msra.mxu0 %v1034
        %1039 = vmatprep.subr.mxu0 0.0
        %1040 = vmatpush1.msra.mxu0 0.0
        %1041 = vmatprep.subr.mxu0 0.0
        %1042 = vmatpush1.msra.mxu0 0.0
        %1043 = vmatprep.subr.mxu0 0.0
        %1044 = vmatpush1.msra.mxu0 0.0
        %1045 = vmatprep.subr.mxu0 0.0
        %1046 = vmatpush1.msra.mxu0 0.0
        %1047 = vmatprep.subr.mxu0 0.0
        %1048 = vmatpush1.msra.mxu0 0.0
        %1049 = vmatprep.subr.mxu0 0.0
        %1050 = vmatpush1.msra.mxu0 0.0
        %1051 = vmatprep.subr.mxu0 0.0
        %1052 = vmatpush1.msra.mxu0 0.0
        %1053 = vmatprep.subr.mxu0 0.0
        %1054 = vmatpush1.msra.mxu0 0.0
        %1055 = vmatprep.subr.mxu0 0.0
        %1056 = vmatpush1.msra.mxu0 0.0
        %1057 = vmatprep.subr.mxu0 0.0
        %1058 = vmatpush1.msra.mxu0 0.0
        %1059 = vmatprep.subr.mxu0 0.0
        %1060 = vmatpush1.msra.mxu0 0.0
        %1061 = vmatprep.subr.mxu0 0.0
        %1062 = vmatpush1.msra.mxu0 0.0
        %1063 = vmatprep.subr.mxu0 0.0
        %1064 = vmatpush1.msra.mxu0 0.0
        %1065 = vmatprep.subr.mxu0 0.0
        %1066 = vmatpush1.msra.mxu0 0.0
        %1067 = vmatprep.subr.mxu0 0.0
        %1068 = vmatpush1.msra.mxu0 0.0
        %1069 = vmatprep.subr.mxu0 0.0
        %1070 = vmatpush1.msra.mxu0 0.0
        %1071 = vmatprep.subr.mxu0 0.0
        %1072 = vmatpush1.msra.mxu0 0.0
        %1073 = vmatprep.subr.mxu0 0.0
        %1074 = vmatpush1.msra.mxu0 0.0
        %1075 = vmatprep.subr.mxu0 0.0
        %1076 = vmatpush1.msra.mxu0 0.0
        %1077 = vmatprep.subr.mxu0 0.0
        %1078 = vmatpush1.msra.mxu0 0.0
        %1079 = vmatprep.subr.mxu0 0.0
        %1080 = vmatpush1.msra.mxu0 0.0
        %1081 = vmatprep.subr.mxu0 0.0
        %1082 = vmatpush1.msra.mxu0 0.0
        %1083 = vmatprep.subr.mxu0 0.0
        %1084 = vmatpush1.msra.mxu0 0.0
        %1085 = vmatprep.subr.mxu0 0.0
        %1086 = vmatpush1.msra.mxu0 0.0
        %1087 = vmatprep.subr.mxu0 0.0
        %1088 = vmatpush1.msra.mxu0 0.0
        %1089 = vmatprep.subr.mxu0 0.0
        %1090 = vmatpush1.msra.mxu0 0.0
        %1091 = vmatprep.subr.mxu0 0.0
        %1092 = vmatpush1.msra.mxu0 0.0
        %1093 = vmatprep.subr.mxu0 0.0
        %1094 = vmatpush1.msra.mxu0 0.0
        %1095 = vmatprep.subr.mxu0 0.0
        %1096 = vmatpush1.msra.mxu0 0.0
        %1097 = vmatprep.subr.mxu0 0.0
        %1098 = vmatpush1.msra.mxu0 0.0
        %1099 = vmatprep.mubr.f32.mxu0 0.0
        %1100 = vmatmul.mubr.f32.gmra.mrb[0].mxu0 %v931
        %v1101 = vpop.f32.mrb[0].mxu0
        %v1102 = vadd.f32 1e-05, %v1101
        %v1103 = vpop.f32.mrb[0].mxu0
        %1104 = vmatprep.mubr.f32.mxu0 0.0
        %1105 = vmatmul.mubr.f32.gmra.mrb[0].mxu0 %v934
        %v1106 = vpop.f32.mrb[0].mxu0
        %v1107 = vadd.f32 1e-05, %v1106
        %v1108 = vpop.f32.mrb[0].mxu0
        %1109 = vdwg.mxu0
        %v1110 = vrsqrt.pop %v1102
        %v1111 = vrsqrt.pop %v1107
        %1113 = vset.pattern.permute.xlu0 0
        %1114 = vperm.xlu0 %1113, %v1110
        %v1115 = vpop.permute.xlu0 %1114
        %1118 = vset.pattern.permute.xlu0 0
        %1119 = vperm.xlu0 %1118, %v1111
        %v1120 = vpop.permute.xlu0 %1119
        %v1122 = vmul.f32 %v1021, %v1115
        %v1123 = vmul.f32 %v1022, %v1115
        %v1124 = vmul.f32 %v1023, %v1120
        %v1125 = vmul.f32 %v1024, %v1120
        %v1126 = vld [vmem:[%s528] sm:$0xff]
        %v1127 = vld [vmem:[%s528 + $0x8] sm:$0xff]
        %1129 = vset.pattern.permute.xlu0 0
        %1130 = vperm.xlu0 %1129, %v1126
        %v1131 = vpop.permute.xlu0 %1130
        %1134 = vset.pattern.permute.xlu0 0
        %1135 = vperm.xlu0 %1134, %v1127
        %v1136 = vpop.permute.xlu0 %1135
        %v1138 = vmul.f32 %v1122, %v1131
        %v1139 = vmul.f32 %v1123, %v1131
        %v1140 = vmul.f32 %v1124, %v1136
        %v1141 = vmul.f32 %v1125, %v1136
        %v1142 = vld [vmem:[%s533] sm:$0xff]
        %v1143 = vld [vmem:[%s533 + $0x8] sm:$0xff]
        %1145 = vset.pattern.permute.xlu0 0
        %1146 = vperm.xlu0 %1145, %v1142
        %v1147 = vpop.permute.xlu0 %1146
        %1150 = vset.pattern.permute.xlu0 0
        %1151 = vperm.xlu0 %1150, %v1143
        %v1152 = vpop.permute.xlu0 %1151
        %v1154 = vadd.f32 %v1138, %v1147
        %v1155 = vadd.f32 %v1139, %v1147
        %v1156 = vadd.f32 %v1140, %v1152
        %v1157 = vadd.f32 %v1141, %v1152
        %v1158 = vxor.u32 %v1154, 2147483648
        %v1159 = vxor.u32 %v1155, 2147483648
        %v1160 = vxor.u32 %v1156, 2147483648
        %v1161 = vxor.u32 %v1157, 2147483648
        %v1162 = vmul.f32 %v1158, 1.442695
        %v1163 = vpow.pop %v1162
        %v1164 = vmul.f32 %v1159, 1.442695
        %v1165 = vpow.pop %v1164
        %v1166 = vmul.f32 %v1160, 1.442695
        %v1167 = vpow.pop %v1166
        %v1168 = vmul.f32 %v1161, 1.442695
        %v1169 = vpow.pop %v1168
        %v1170 = vadd.f32 %v1163, 1.0
        %v1171 = vadd.f32 %v1165, 1.0
        %v1172 = vadd.f32 %v1167, 1.0
        %v1173 = vadd.f32 %v1169, 1.0
        %v1174 = vrcp.pop %v1170
        %v1175 = vmul.f32 1.0, %v1174
        %v1176 = vrcp.pop %v1171
        %v1177 = vmul.f32 1.0, %v1176
        %v1178 = vrcp.pop %v1172
        %v1179 = vmul.f32 1.0, %v1178
        %v1180 = vrcp.pop %v1173
        %v1181 = vmul.f32 1.0, %v1180
        %v1182 = vmul.f32 %v1154, %v1175
        %v1183 = vmul.f32 %v1155, %v1177
        %v1184 = vmul.f32 %v1156, %v1179
        %v1185 = vmul.f32 %v1157, %v1181
        %1186 = vrot.lane.b32.xlu0 %v1182, 17
        %v1187 = vpop.permute.xlu0 %1186
        %1188 = vrot.lane.b32.xlu0 %v1184, 17
        %v1189 = vpop.permute.xlu0 %1188
        %1190 = vrot.lane.b32.xlu0 %v1183, 17
        %v1191 = vpop.permute.xlu0 %1190
        %1192 = vrot.lane.b32.xlu0 %v1185, 17
        %v1193 = vpop.permute.xlu0 %1192
        %v1194 = vsel %vm566, %v1187, %v1191
        %v1195 = vsel %vm566, %v1189, %v1193
        %v1196 = vsel %vm566, %v1191, %v1187
        %v1197 = vsel %vm566, %v1193, %v1189
        %v1198 = vmul.f32 %v1196, %v576
        %v1199 = vmul.f32 %v1194, %v580
        %v1200 = vmul.f32 %v1197, %v576
        %v1201 = vmul.f32 %v1195, %v580
        %1202 = vrot.lane.b32.xlu0 %v1182, 16
        %v1203 = vpop.permute.xlu0 %1202
        %1204 = vrot.lane.b32.xlu0 %v1184, 16
        %v1205 = vpop.permute.xlu0 %1204
        %1206 = vrot.lane.b32.xlu0 %v1183, 16
        %v1207 = vpop.permute.xlu0 %1206
        %1208 = vrot.lane.b32.xlu0 %v1185, 16
        %v1209 = vpop.permute.xlu0 %1208
        %v1210 = vsel %vm599, %v1203, %v1207
        %v1211 = vsel %vm599, %v1205, %v1209
        %v1212 = vsel %vm599, %v1207, %v1203
        %v1213 = vsel %vm599, %v1209, %v1205
        %v1214 = vmul.f32 %v1212, %v609
        %v1215 = vmul.f32 %v1210, %v613
        %v1216 = vmul.f32 %v1213, %v609
        %v1217 = vmul.f32 %v1211, %v613
        %1218 = vrot.lane.b32.xlu0 %v1182, 15
        %v1219 = vpop.permute.xlu0 %1218
        %1220 = vrot.lane.b32.xlu0 %v1184, 15
        %v1221 = vpop.permute.xlu0 %1220
        %1222 = vrot.lane.b32.xlu0 %v1183, 15
        %v1223 = vpop.permute.xlu0 %1222
        %1224 = vrot.lane.b32.xlu0 %v1185, 15
        %v1225 = vpop.permute.xlu0 %1224
        %v1226 = vsel %vm632, %v1219, %v1223
        %v1227 = vsel %vm632, %v1221, %v1225
        %v1228 = vsel %vm632, %v1223, %v1219
        %v1229 = vsel %vm632, %v1225, %v1221
        %v1230 = vmul.f32 %v1228, %v642
        %v1231 = vmul.f32 %v1226, %v646
        %v1232 = vmul.f32 %v1229, %v642
        %v1233 = vmul.f32 %v1227, %v646
        %1234 = vrot.lane.b32.xlu0 %v1182, 1
        %v1235 = vpop.permute.xlu0 %1234
        %1236 = vrot.lane.b32.xlu0 %v1184, 1
        %v1237 = vpop.permute.xlu0 %1236
        %1238 = vrot.lane.b32.xlu0 %v1183, 1
        %v1239 = vpop.permute.xlu0 %1238
        %1240 = vrot.lane.b32.xlu0 %v1185, 1
        %v1241 = vpop.permute.xlu0 %1240
        %v1242 = vsel %vm665, %v1235, %v1239
        %v1243 = vsel %vm665, %v1237, %v1241
        %v1244 = vsel %vm665, %v1239, %v1235
        %v1245 = vsel %vm665, %v1241, %v1237
        %v1246 = vmul.f32 %v1244, %v675
        %v1247 = vmul.f32 %v1242, %v679
        %v1248 = vmul.f32 %v1245, %v675
        %v1249 = vmul.f32 %v1243, %v679
        %1250 = vrot.lane.b32.xlu0 %v1182, 127
        %v1251 = vpop.permute.xlu0 %1250
        %1252 = vrot.lane.b32.xlu0 %v1184, 127
        %v1253 = vpop.permute.xlu0 %1252
        %1254 = vrot.lane.b32.xlu0 %v1183, 127
        %v1255 = vpop.permute.xlu0 %1254
        %1256 = vrot.lane.b32.xlu0 %v1185, 127
        %v1257 = vpop.permute.xlu0 %1256
        %v1258 = vsel %vm698, %v1251, %v1255
        %v1259 = vsel %vm698, %v1253, %v1257
        %v1260 = vsel %vm698, %v1255, %v1251
        %v1261 = vsel %vm698, %v1257, %v1253
        %v1262 = vmul.f32 %v1258, %v708
        %v1263 = vmul.f32 %v1260, %v712
        %v1264 = vmul.f32 %v1259, %v708
        %v1265 = vmul.f32 %v1261, %v712
        %1266 = vrot.lane.b32.xlu0 %v1182, 113
        %v1267 = vpop.permute.xlu0 %1266
        %1268 = vrot.lane.b32.xlu0 %v1184, 113
        %v1269 = vpop.permute.xlu0 %1268
        %1270 = vrot.lane.b32.xlu0 %v1183, 113
        %v1271 = vpop.permute.xlu0 %1270
        %1272 = vrot.lane.b32.xlu0 %v1185, 113
        %v1273 = vpop.permute.xlu0 %1272
        %v1274 = vsel %vm731, %v1267, %v1271
        %v1275 = vsel %vm731, %v1269, %v1273
        %v1276 = vsel %vm731, %v1271, %v1267
        %v1277 = vsel %vm731, %v1273, %v1269
        %v1278 = vmul.f32 %v1274, %v741
        %v1279 = vmul.f32 %v1276, %v745
        %v1280 = vmul.f32 %v1275, %v741
        %v1281 = vmul.f32 %v1277, %v745
        %1282 = vrot.lane.b32.xlu0 %v1182, 112
        %v1283 = vpop.permute.xlu0 %1282
        %1284 = vrot.lane.b32.xlu0 %v1184, 112
        %v1285 = vpop.permute.xlu0 %1284
        %1286 = vrot.lane.b32.xlu0 %v1183, 112
        %v1287 = vpop.permute.xlu0 %1286
        %1288 = vrot.lane.b32.xlu0 %v1185, 112
        %v1289 = vpop.permute.xlu0 %1288
        %v1290 = vsel %vm764, %v1283, %v1287
        %v1291 = vsel %vm764, %v1285, %v1289
        %v1292 = vsel %vm764, %v1287, %v1283
        %v1293 = vsel %vm764, %v1289, %v1285
        %v1294 = vmul.f32 %v1290, %v774
        %v1295 = vmul.f32 %v1292, %v778
        %v1296 = vmul.f32 %v1291, %v774
        %v1297 = vmul.f32 %v1293, %v778
        %1298 = vrot.lane.b32.xlu0 %v1182, 111
        %v1299 = vpop.permute.xlu0 %1298
        %1300 = vrot.lane.b32.xlu0 %v1184, 111
        %v1301 = vpop.permute.xlu0 %1300
        %1302 = vrot.lane.b32.xlu0 %v1183, 111
        %v1303 = vpop.permute.xlu0 %1302
        %1304 = vrot.lane.b32.xlu0 %v1185, 111
        %v1305 = vpop.permute.xlu0 %1304
        %v1306 = vsel %vm797, %v1299, %v1303
        %v1307 = vsel %vm797, %v1301, %v1305
        %v1308 = vsel %vm797, %v1303, %v1299
        %v1309 = vsel %vm797, %v1305, %v1301
        %v1310 = vmul.f32 %v1306, %v807
        %v1311 = vmul.f32 %v1308, %v811
        %v1312 = vmul.f32 %v1307, %v807
        %v1313 = vmul.f32 %v1309, %v811
        %v1314 = vpack.c.bf16 %v1200, %v1198
        %v1315 = vpack.c.bf16 %v1201, %v1199
        %v1316 = vpack.c.bf16 %v1216, %v1214
        %v1317 = vpack.c.bf16 %v1217, %v1215
        %v1318 = vpack.c.bf16 %v1232, %v1230
        %v1319 = vpack.c.bf16 %v1233, %v1231
        %v1320 = vpack.c.bf16 %v1248, %v1246
        %v1321 = vpack.c.bf16 %v1249, %v1247
        %v1322 = vpack.c.bf16 %v1184, %v1182
        %v1323 = vpack.c.bf16 %v1185, %v1183
        %v1324 = vpack.c.bf16 %v1264, %v1262
        %v1325 = vpack.c.bf16 %v1265, %v1263
        %v1326 = vpack.c.bf16 %v1280, %v1278
        %v1327 = vpack.c.bf16 %v1281, %v1279
        %v1328 = vpack.c.bf16 %v1296, %v1294
        %v1329 = vpack.c.bf16 %v1297, %v1295
        %v1330 = vpack.c.bf16 %v1312, %v1310
        %v1331 = vpack.c.bf16 %v1313, %v1311
        %v1332 = vld [vmem:[%s7] sm:$0xff]
        %v1333 = vld [vmem:[%s7 + $0x8] sm:$0xff]
        %v1334 = vld [vmem:[%s8] sm:$0xff]
        %v1335 = vld [vmem:[%s8 + $0x8] sm:$0xff]
        %1337 = vset.pattern.permute.xlu0 0
        %1338 = vperm.xlu0 %1337, %v1334
        %v1339 = vpop.permute.xlu0 %1338
        %1342 = vset.pattern.permute.xlu0 0
        %1343 = vperm.xlu0 %1342, %v1335
        %v1344 = vpop.permute.xlu0 %1343
        %v1348 = vunpack.c.l.b16 %v1332
        %v1349 = vunpack.c.h.b16 %v1332
        %v1350 = vunpack.c.l.b16 %v1333
        %v1351 = vunpack.c.h.b16 %v1333
        %v1352 = vpack.c.b16 %v1350, %v1348
        %v1353 = vpack.c.b16 %v1351, %v1349
        %v1356 = vsel %vm929, %v1353, 0
        %1358 = vmatprep.subr.bf16.mxu0 %v1315
        %1359 = vmatpush1.bf16.msra.mxu0 %v1314
        %1360 = vmatprep.subr.bf16.mxu0 %v1317
        %1361 = vmatpush1.bf16.msra.mxu0 %v1316
        %1362 = vmatprep.subr.bf16.mxu0 %v1319
        %1363 = vmatpush1.bf16.msra.mxu0 %v1318
        %1364 = vmatprep.subr.bf16.mxu0 %v1321
        %1365 = vmatpush1.bf16.msra.mxu0 %v1320
        %1366 = vmatprep.subr.bf16.mxu0 %v1323
        %1367 = vmatpush1.bf16.msra.mxu0 %v1322
        %1368 = vmatprep.subr.bf16.mxu0 %v1325
        %1369 = vmatpush1.bf16.msra.mxu0 %v1324
        %1370 = vmatprep.subr.bf16.mxu0 %v1327
        %1371 = vmatpush1.bf16.msra.mxu0 %v1326
        %1372 = vmatprep.subr.bf16.mxu0 %v1329
        %1373 = vmatpush1.bf16.msra.mxu0 %v1328
        %1374 = vmatprep.subr.bf16.mxu0 %v1331
        %1375 = vmatpush1.bf16.msra.mxu0 %v1330
        %1376 = vmatprep.subr.bf16.mxu0 0
        %1377 = vmatpush1.bf16.msra.mxu0 0
        %1378 = vmatprep.subr.bf16.mxu0 0
        %1379 = vmatpush1.bf16.msra.mxu0 0
        %1380 = vmatprep.subr.bf16.mxu0 0
        %1381 = vmatpush1.bf16.msra.mxu0 0
        %1382 = vmatprep.subr.bf16.mxu0 0
        %1383 = vmatpush1.bf16.msra.mxu0 0
        %1384 = vmatprep.subr.bf16.mxu0 0
        %1385 = vmatpush1.bf16.msra.mxu0 0
        %1386 = vmatprep.subr.bf16.mxu0 0
        %1387 = vmatpush1.bf16.msra.mxu0 0
        %1388 = vmatprep.subr.bf16.mxu0 0
        %1389 = vmatpush1.bf16.msra.mxu0 0
        %1390 = vmatprep.mubr.bf16.mxu0 %v1356
        %1391 = vmatmul.mubr.bf16.gmra.mrb[0].mxu0 %v1352
        %v1392 = vpop.f32.mrb[0].mxu0
        %v1393 = vadd.f32 %v1339, %v1392
        %v1394 = vpop.f32.mrb[0].mxu0
        %v1395 = vadd.f32 %v1339, %v1394
        %v1396 = vpop.f32.mrb[0].mxu0
        %v1397 = vadd.f32 %v1344, %v1396
        %v1398 = vpop.f32.mrb[0].mxu0
        %v1399 = vadd.f32 %v1344, %v1398
        %1400 = vdwg.mxu0
        %v1401 = vadd.f32 %v1393, %v1395
        %1402 = vadd.xlane.f32.xlu0 %v1401
        %v1403 = vpop.xlane.xlu0 %1402
        %v1404 = vadd.f32 %v1397, %v1399
        %1405 = vadd.xlane.f32.xlu0 %v1404
        %v1406 = vpop.xlane.xlu0 %1405
        %1407 = vmatprep.subr.mxu0 0.0
        %1408 = vmatpush1.msra.mxu0 %v1403
        %1409 = vmatprep.subr.mxu0 0.0
        %1410 = vmatpush1.msra.mxu0 %v1406
        %1411 = vmatprep.subr.mxu0 0.0
        %1412 = vmatpush1.msra.mxu0 0.0
        %1413 = vmatprep.subr.mxu0 0.0
        %1414 = vmatpush1.msra.mxu0 0.0
        %1415 = vmatprep.subr.mxu0 0.0
        %1416 = vmatpush1.msra.mxu0 0.0
        %1417 = vmatprep.subr.mxu0 0.0
        %1418 = vmatpush1.msra.mxu0 0.0
        %1419 = vmatprep.subr.mxu0 0.0
        %1420 = vmatpush1.msra.mxu0 0.0
        %1421 = vmatprep.subr.mxu0 0.0
        %1422 = vmatpush1.msra.mxu0 0.0
        %1423 = vmatprep.subr.mxu0 0.0
        %1424 = vmatpush1.msra.mxu0 0.0
        %1425 = vmatprep.subr.mxu0 0.0
        %1426 = vmatpush1.msra.mxu0 0.0
        %1427 = vmatprep.subr.mxu0 0.0
        %1428 = vmatpush1.msra.mxu0 0.0
        %1429 = vmatprep.subr.mxu0 0.0
        %1430 = vmatpush1.msra.mxu0 0.0
        %1431 = vmatprep.subr.mxu0 0.0
        %1432 = vmatpush1.msra.mxu0 0.0
        %1433 = vmatprep.subr.mxu0 0.0
        %1434 = vmatpush1.msra.mxu0 0.0
        %1435 = vmatprep.subr.mxu0 0.0
        %1436 = vmatpush1.msra.mxu0 0.0
        %1437 = vmatprep.subr.mxu0 0.0
        %1438 = vmatpush1.msra.mxu0 0.0
        %1439 = vmatprep.subr.mxu0 0.0
        %1440 = vmatpush1.msra.mxu0 0.0
        %1441 = vmatprep.subr.mxu0 0.0
        %1442 = vmatpush1.msra.mxu0 0.0
        %1443 = vmatprep.subr.mxu0 0.0
        %1444 = vmatpush1.msra.mxu0 0.0
        %1445 = vmatprep.subr.mxu0 0.0
        %1446 = vmatpush1.msra.mxu0 0.0
        %1447 = vmatprep.subr.mxu0 0.0
        %1448 = vmatpush1.msra.mxu0 0.0
        %1449 = vmatprep.subr.mxu0 0.0
        %1450 = vmatpush1.msra.mxu0 0.0
        %1451 = vmatprep.subr.mxu0 0.0
        %1452 = vmatpush1.msra.mxu0 0.0
        %1453 = vmatprep.subr.mxu0 0.0
        %1454 = vmatpush1.msra.mxu0 0.0
        %1455 = vmatprep.subr.mxu0 0.0
        %1456 = vmatpush1.msra.mxu0 0.0
        %1457 = vmatprep.subr.mxu0 0.0
        %1458 = vmatpush1.msra.mxu0 0.0
        %1459 = vmatprep.subr.mxu0 0.0
        %1460 = vmatpush1.msra.mxu0 0.0
        %1461 = vmatprep.subr.mxu0 0.0
        %1462 = vmatpush1.msra.mxu0 0.0
        %1463 = vmatprep.subr.mxu0 0.0
        %1464 = vmatpush1.msra.mxu0 0.0
        %1465 = vmatprep.subr.mxu0 0.0
        %1466 = vmatpush1.msra.mxu0 0.0
        %1467 = vmatprep.subr.mxu0 0.0
        %1468 = vmatpush1.msra.mxu0 0.0
        %1469 = vmatprep.subr.mxu0 0.0
        %1470 = vmatpush1.msra.mxu0 0.0
        %1471 = vmatprep.mubr.f32.mxu0 0.0
        %1472 = vmatmul.mubr.f32.gmra.mrb[0].mxu0 %v931
        %v1473 = vpop.f32.mrb[0].mxu0
        %v1474 = vadd.f32 0.0, %v1473
        %v1475 = vpop.f32.mrb[0].mxu0
        %1476 = vmatprep.mubr.f32.mxu0 0.0
        %1477 = vmatmul.mubr.f32.gmra.mrb[0].mxu0 %v934
        %v1478 = vpop.f32.mrb[0].mxu0
        %v1479 = vadd.f32 0.0, %v1478
        %v1480 = vpop.f32.mrb[0].mxu0
        %1481 = vdwg.mxu0
        %1483 = vset.pattern.permute.xlu0 0
        %1484 = vperm.xlu0 %1483, %v1474
        %v1485 = vpop.permute.xlu0 %1484
        %1488 = vset.pattern.permute.xlu0 0
        %1489 = vperm.xlu0 %1488, %v1479
        %v1490 = vpop.permute.xlu0 %1489
        %v1492 = vsub.f32 %v1393, %v1485
        %v1493 = vsub.f32 %v1395, %v1485
        %v1494 = vsub.f32 %v1397, %v1490
        %v1495 = vsub.f32 %v1399, %v1490
        %v1496 = vmul.f32 %v1492, %v1492
        %v1497 = vmul.f32 %v1493, %v1493
        %v1498 = vmul.f32 %v1494, %v1494
        %v1499 = vmul.f32 %v1495, %v1495
        %v1500 = vadd.f32 %v1496, %v1497
        %1501 = vadd.xlane.f32.xlu0 %v1500
        %v1502 = vpop.xlane.xlu0 %1501
        %v1503 = vadd.f32 %v1498, %v1499
        %1504 = vadd.xlane.f32.xlu0 %v1503
        %v1505 = vpop.xlane.xlu0 %1504
        %1506 = vmatprep.subr.mxu0 0.0
        %1507 = vmatpush1.msra.mxu0 %v1502
        %1508 = vmatprep.subr.mxu0 0.0
        %1509 = vmatpush1.msra.mxu0 %v1505
        %1510 = vmatprep.subr.mxu0 0.0
        %1511 = vmatpush1.msra.mxu0 0.0
        %1512 = vmatprep.subr.mxu0 0.0
        %1513 = vmatpush1.msra.mxu0 0.0
        %1514 = vmatprep.subr.mxu0 0.0
        %1515 = vmatpush1.msra.mxu0 0.0
        %1516 = vmatprep.subr.mxu0 0.0
        %1517 = vmatpush1.msra.mxu0 0.0
        %1518 = vmatprep.subr.mxu0 0.0
        %1519 = vmatpush1.msra.mxu0 0.0
        %1520 = vmatprep.subr.mxu0 0.0
        %1521 = vmatpush1.msra.mxu0 0.0
        %1522 = vmatprep.subr.mxu0 0.0
        %1523 = vmatpush1.msra.mxu0 0.0
        %1524 = vmatprep.subr.mxu0 0.0
        %1525 = vmatpush1.msra.mxu0 0.0
        %1526 = vmatprep.subr.mxu0 0.0
        %1527 = vmatpush1.msra.mxu0 0.0
        %1528 = vmatprep.subr.mxu0 0.0
        %1529 = vmatpush1.msra.mxu0 0.0
        %1530 = vmatprep.subr.mxu0 0.0
        %1531 = vmatpush1.msra.mxu0 0.0
        %1532 = vmatprep.subr.mxu0 0.0
        %1533 = vmatpush1.msra.mxu0 0.0
        %1534 = vmatprep.subr.mxu0 0.0
        %1535 = vmatpush1.msra.mxu0 0.0
        %1536 = vmatprep.subr.mxu0 0.0
        %1537 = vmatpush1.msra.mxu0 0.0
        %1538 = vmatprep.subr.mxu0 0.0
        %1539 = vmatpush1.msra.mxu0 0.0
        %1540 = vmatprep.subr.mxu0 0.0
        %1541 = vmatpush1.msra.mxu0 0.0
        %1542 = vmatprep.subr.mxu0 0.0
        %1543 = vmatpush1.msra.mxu0 0.0
        %1544 = vmatprep.subr.mxu0 0.0
        %1545 = vmatpush1.msra.mxu0 0.0
        %1546 = vmatprep.subr.mxu0 0.0
        %1547 = vmatpush1.msra.mxu0 0.0
        %1548 = vmatprep.subr.mxu0 0.0
        %1549 = vmatpush1.msra.mxu0 0.0
        %1550 = vmatprep.subr.mxu0 0.0
        %1551 = vmatpush1.msra.mxu0 0.0
        %1552 = vmatprep.subr.mxu0 0.0
        %1553 = vmatpush1.msra.mxu0 0.0
        %1554 = vmatprep.subr.mxu0 0.0
        %1555 = vmatpush1.msra.mxu0 0.0
        %1556 = vmatprep.subr.mxu0 0.0
        %1557 = vmatpush1.msra.mxu0 0.0
        %1558 = vmatprep.subr.mxu0 0.0
        %1559 = vmatpush1.msra.mxu0 0.0
        %1560 = vmatprep.subr.mxu0 0.0
        %1561 = vmatpush1.msra.mxu0 0.0
        %1562 = vmatprep.subr.mxu0 0.0
        %1563 = vmatpush1.msra.mxu0 0.0
        %1564 = vmatprep.subr.mxu0 0.0
        %1565 = vmatpush1.msra.mxu0 0.0
        %1566 = vmatprep.subr.mxu0 0.0
        %1567 = vmatpush1.msra.mxu0 0.0
        %1568 = vmatprep.subr.mxu0 0.0
        %1569 = vmatpush1.msra.mxu0 0.0
        %1570 = vmatprep.mubr.f32.mxu0 0.0
        %1571 = vmatmul.mubr.f32.gmra.mrb[0].mxu0 %v931
        %v1572 = vpop.f32.mrb[0].mxu0
        %v1573 = vadd.f32 1e-05, %v1572
        %v1574 = vpop.f32.mrb[0].mxu0
        %1575 = vmatprep.mubr.f32.mxu0 0.0
        %1576 = vmatmul.mubr.f32.gmra.mrb[0].mxu0 %v934
        %v1577 = vpop.f32.mrb[0].mxu0
        %v1578 = vadd.f32 1e-05, %v1577
        %v1579 = vpop.f32.mrb[0].mxu0
        %1580 = vdwg.mxu0
        %v1581 = vrsqrt.pop %v1573
        %v1582 = vrsqrt.pop %v1578
        %1584 = vset.pattern.permute.xlu0 0
        %1585 = vperm.xlu0 %1584, %v1581
        %v1586 = vpop.permute.xlu0 %1585
        %1589 = vset.pattern.permute.xlu0 0
        %1590 = vperm.xlu0 %1589, %v1582
        %v1591 = vpop.permute.xlu0 %1590
        %v1593 = vmul.f32 %v1492, %v1586
        %v1594 = vmul.f32 %v1493, %v1586
        %v1595 = vmul.f32 %v1494, %v1591
        %v1596 = vmul.f32 %v1495, %v1591
        %v1597 = vld [vmem:[%s9] sm:$0xff]
        %v1598 = vld [vmem:[%s9 + $0x8] sm:$0xff]
        %1600 = vset.pattern.permute.xlu0 0
        %1601 = vperm.xlu0 %1600, %v1597
        %v1602 = vpop.permute.xlu0 %1601
        %1605 = vset.pattern.permute.xlu0 0
        %1606 = vperm.xlu0 %1605, %v1598
        %v1607 = vpop.permute.xlu0 %1606
        %v1609 = vmul.f32 %v1593, %v1602
        %v1610 = vmul.f32 %v1594, %v1602
        %v1611 = vmul.f32 %v1595, %v1607
        %v1612 = vmul.f32 %v1596, %v1607
        %v1613 = vld [vmem:[%s10] sm:$0xff]
        %v1614 = vld [vmem:[%s10 + $0x8] sm:$0xff]
        %1616 = vset.pattern.permute.xlu0 0
        %1617 = vperm.xlu0 %1616, %v1613
        %v1618 = vpop.permute.xlu0 %1617
        %1621 = vset.pattern.permute.xlu0 0
        %1622 = vperm.xlu0 %1621, %v1614
        %v1623 = vpop.permute.xlu0 %1622
        %v1625 = vadd.f32 %v1609, %v1618
        %v1626 = vadd.f32 %v1610, %v1618
        %v1627 = vadd.f32 %v1611, %v1623
        %v1628 = vadd.f32 %v1612, %v1623
        %v1629 = vxor.u32 %v1625, 2147483648
        %v1630 = vxor.u32 %v1626, 2147483648
        %v1631 = vxor.u32 %v1627, 2147483648
        %v1632 = vxor.u32 %v1628, 2147483648
        %v1633 = vmul.f32 %v1629, 1.442695
        %v1634 = vpow.pop %v1633
        %v1635 = vmul.f32 %v1630, 1.442695
        %v1636 = vpow.pop %v1635
        %v1637 = vmul.f32 %v1631, 1.442695
        %v1638 = vpow.pop %v1637
        %v1639 = vmul.f32 %v1632, 1.442695
        %v1640 = vpow.pop %v1639
        %v1641 = vadd.f32 %v1634, 1.0
        %v1642 = vadd.f32 %v1636, 1.0
        %v1643 = vadd.f32 %v1638, 1.0
        %v1644 = vadd.f32 %v1640, 1.0
        %v1645 = vrcp.pop %v1641
        %v1646 = vmul.f32 1.0, %v1645
        %v1647 = vrcp.pop %v1642
        %v1648 = vmul.f32 1.0, %v1647
        %v1649 = vrcp.pop %v1643
        %v1650 = vmul.f32 1.0, %v1649
        %v1651 = vrcp.pop %v1644
        %v1652 = vmul.f32 1.0, %v1651
        %v1653 = vmul.f32 %v1625, %v1646
        %v1654 = vmul.f32 %v1626, %v1648
        %v1655 = vmul.f32 %v1627, %v1650
        %v1656 = vmul.f32 %v1628, %v1652
        %v1657 = vld [vmem:[%s11] sm:$0x7]
        %v1658 = vld [vmem:[%s12] sm:$0x7]
        %vm1659 = vcmask 195584
        %v1661 = vsel %vm1659, %v1658, 0
        %1663 = vmatprep.subr.mxu0 %v541
        %1664 = vmatpush1.msra.mxu0 %v540
        %1665 = vmatprep.subr.mxu0 %v543
        %1666 = vmatpush1.msra.mxu0 %v542
        %1667 = vmatprep.subr.mxu0 %v545
        %1668 = vmatpush1.msra.mxu0 %v544
        %1669 = vmatprep.subr.mxu0 0.0
        %1670 = vmatpush1.msra.mxu0 0.0
        %1671 = vmatprep.subr.mxu0 0.0
        %1672 = vmatpush1.msra.mxu0 0.0
        %1673 = vmatprep.subr.mxu0 0.0
        %1674 = vmatpush1.msra.mxu0 0.0
        %1675 = vmatprep.subr.mxu0 0.0
        %1676 = vmatpush1.msra.mxu0 0.0
        %1677 = vmatprep.subr.mxu0 0.0
        %1678 = vmatpush1.msra.mxu0 0.0
        %1679 = vmatprep.subr.mxu0 0.0
        %1680 = vmatpush1.msra.mxu0 0.0
        %1681 = vmatprep.subr.mxu0 0.0
        %1682 = vmatpush1.msra.mxu0 0.0
        %1683 = vmatprep.subr.mxu0 0.0
        %1684 = vmatpush1.msra.mxu0 0.0
        %1685 = vmatprep.subr.mxu0 0.0
        %1686 = vmatpush1.msra.mxu0 0.0
        %1687 = vmatprep.subr.mxu0 0.0
        %1688 = vmatpush1.msra.mxu0 0.0
        %1689 = vmatprep.subr.mxu0 0.0
        %1690 = vmatpush1.msra.mxu0 0.0
        %1691 = vmatprep.subr.mxu0 0.0
        %1692 = vmatpush1.msra.mxu0 0.0
        %1693 = vmatprep.subr.mxu0 0.0
        %1694 = vmatpush1.msra.mxu0 0.0
        %1695 = vmatprep.subr.mxu0 0.0
        %1696 = vmatpush1.msra.mxu0 0.0
        %1697 = vmatprep.subr.mxu0 0.0
        %1698 = vmatpush1.msra.mxu0 0.0
        %1699 = vmatprep.subr.mxu0 0.0
        %1700 = vmatpush1.msra.mxu0 0.0
        %1701 = vmatprep.subr.mxu0 0.0
        %1702 = vmatpush1.msra.mxu0 0.0
        %1703 = vmatprep.subr.mxu0 0.0
        %1704 = vmatpush1.msra.mxu0 0.0
        %1705 = vmatprep.subr.mxu0 0.0
        %1706 = vmatpush1.msra.mxu0 0.0
        %1707 = vmatprep.subr.mxu0 0.0
        %1708 = vmatpush1.msra.mxu0 0.0
        %1709 = vmatprep.subr.mxu0 0.0
        %1710 = vmatpush1.msra.mxu0 0.0
        %1711 = vmatprep.subr.mxu0 0.0
        %1712 = vmatpush1.msra.mxu0 0.0
        %1713 = vmatprep.subr.mxu0 0.0
        %1714 = vmatpush1.msra.mxu0 0.0
        %1715 = vmatprep.subr.mxu0 0.0
        %1716 = vmatpush1.msra.mxu0 0.0
        %1717 = vmatprep.subr.mxu0 0.0
        %1718 = vmatpush1.msra.mxu0 0.0
        %1719 = vmatprep.subr.mxu0 0.0
        %1720 = vmatpush1.msra.mxu0 0.0
        %1721 = vmatprep.subr.mxu0 0.0
        %1722 = vmatpush1.msra.mxu0 0.0
        %1723 = vmatprep.subr.mxu0 0.0
        %1724 = vmatpush1.msra.mxu0 0.0
        %1725 = vmatprep.subr.mxu0 0.0
        %1726 = vmatpush1.msra.mxu0 0.0
        %1727 = vmatprep.mubr.f32.mxu0 0.0
        %1728 = vmatmul.mubr.f32.gmra.mrb[0].mxu0 %v1661
        %v1729 = vpop.f32.mrb[0].mxu0
        %v1730 = vadd.f32 0.0, %v1729
        %v1731 = vpop.f32.mrb[0].mxu0
        %v1732 = vadd.f32 0.0, %v1731
        %1733 = vdwg.mxu0
        %v1735 = vsel %vm929, %v1657, 0
        %1737 = vmatprep.subr.mxu0 %v1654
        %1738 = vmatpush1.msra.mxu0 %v1653
        %1739 = vmatprep.subr.mxu0 %v1656
        %1740 = vmatpush1.msra.mxu0 %v1655
        %1741 = vmatprep.subr.mxu0 0.0
        %1742 = vmatpush1.msra.mxu0 0.0
        %1743 = vmatprep.subr.mxu0 0.0
        %1744 = vmatpush1.msra.mxu0 0.0
        %1745 = vmatprep.subr.mxu0 0.0
        %1746 = vmatpush1.msra.mxu0 0.0
        %1747 = vmatprep.subr.mxu0 0.0
        %1748 = vmatpush1.msra.mxu0 0.0
        %1749 = vmatprep.subr.mxu0 0.0
        %1750 = vmatpush1.msra.mxu0 0.0
        %1751 = vmatprep.subr.mxu0 0.0
        %1752 = vmatpush1.msra.mxu0 0.0
        %1753 = vmatprep.subr.mxu0 0.0
        %1754 = vmatpush1.msra.mxu0 0.0
        %1755 = vmatprep.subr.mxu0 0.0
        %1756 = vmatpush1.msra.mxu0 0.0
        %1757 = vmatprep.subr.mxu0 0.0
        %1758 = vmatpush1.msra.mxu0 0.0
        %1759 = vmatprep.subr.mxu0 0.0
        %1760 = vmatpush1.msra.mxu0 0.0
        %1761 = vmatprep.subr.mxu0 0.0
        %1762 = vmatpush1.msra.mxu0 0.0
        %1763 = vmatprep.subr.mxu0 0.0
        %1764 = vmatpush1.msra.mxu0 0.0
        %1765 = vmatprep.subr.mxu0 0.0
        %1766 = vmatpush1.msra.mxu0 0.0
        %1767 = vmatprep.subr.mxu0 0.0
        %1768 = vmatpush1.msra.mxu0 0.0
        %1769 = vmatprep.subr.mxu0 0.0
        %1770 = vmatpush1.msra.mxu0 0.0
        %1771 = vmatprep.subr.mxu0 0.0
        %1772 = vmatpush1.msra.mxu0 0.0
        %1773 = vmatprep.subr.mxu0 0.0
        %1774 = vmatpush1.msra.mxu0 0.0
        %1775 = vmatprep.subr.mxu0 0.0
        %1776 = vmatpush1.msra.mxu0 0.0
        %1777 = vmatprep.subr.mxu0 0.0
        %1778 = vmatpush1.msra.mxu0 0.0
        %1779 = vmatprep.subr.mxu0 0.0
        %1780 = vmatpush1.msra.mxu0 0.0
        %1781 = vmatprep.subr.mxu0 0.0
        %1782 = vmatpush1.msra.mxu0 0.0
        %1783 = vmatprep.subr.mxu0 0.0
        %1784 = vmatpush1.msra.mxu0 0.0
        %1785 = vmatprep.subr.mxu0 0.0
        %1786 = vmatpush1.msra.mxu0 0.0
        %1787 = vmatprep.subr.mxu0 0.0
        %1788 = vmatpush1.msra.mxu0 0.0
        %1789 = vmatprep.subr.mxu0 0.0
        %1790 = vmatpush1.msra.mxu0 0.0
        %1791 = vmatprep.subr.mxu0 0.0
        %1792 = vmatpush1.msra.mxu0 0.0
        %1793 = vmatprep.subr.mxu0 0.0
        %1794 = vmatpush1.msra.mxu0 0.0
        %1795 = vmatprep.subr.mxu0 0.0
        %1796 = vmatpush1.msra.mxu0 0.0
        %1797 = vmatprep.subr.mxu0 0.0
        %1798 = vmatpush1.msra.mxu0 0.0
        %1799 = vmatprep.subr.mxu0 0.0
        %1800 = vmatpush1.msra.mxu0 0.0
        %1801 = vmatprep.mubr.f32.mxu0 0.0
        %1802 = vmatmul.mubr.f32.gmra.mrb[0].mxu0 %v1735
        %v1803 = vpop.f32.mrb[0].mxu0
        %v1804 = vadd.f32 %v1730, %v1803
        %v1805 = vpop.f32.mrb[0].mxu0
        %v1806 = vadd.f32 %v1732, %v1805
        %1807 = vdwg.mxu0
        %v1808 = vld [vmem:[%s13] sm:$0x7]
        %1810 = vset.pattern.permute.xlu0 0
        %1811 = vperm.xlu0 %1810, %v1808
        %v1812 = vpop.permute.xlu0 %1811
        %v1814 = vadd.f32 %v1804, %v1812
        %v1815 = vadd.f32 %v1806, %v1812
        %v1818 = vcombine.low %v1814, %v1815
        %1820 = vst [vmem:[%s538] sm:$0x77] %v1818
        %p1821 = scmp.lt.s32.totalorder %s25, 1
        %s1822 = scalar_select %p1821, %s25, 1
        %s1823 = smul.addr %s1822, 2
        %s1824 = smul.addr %s1823, 4
        %s1825 = scalar_lea.vmem %s14, %s1824
        // Predicated region
        $region100: #{outconv_forward.1} parent=94 // pred_check
          %p1826 = pneg %p352
        $region101: #{outconv_forward.1} parent=94 // pred_check_branch
          %1828 = sbr.rel (%p1826) target = $region103
        $region102: #{outconv_forward.1} parent=94 // pred_region
          _
        $region103: #{outconv_forward.1} parent=94 // pred_fallthru
          _
      $region95: #{outconv_forward.1} parent=5 // pred_fallthru
        _
      %p1829 = scmp.le.s32.totalorder 2, %s20
      // Predicated region
      $region104: #{outconv_forward.1} parent=5 // pred_check
        %p1830 = pneg %p1829
      $region105: #{outconv_forward.1} parent=5 // pred_check_branch
        %1832 = sbr.rel (%p1830) target = $region107
      $region106: #{outconv_forward.1} parent=5 // pred_region
        %s1833 = ssub.s32 %s20, 2
        // Predicated region
        $region108: #{outconv_forward.1} parent=106 // pred_check
          %p1834 = pneg %p358
        $region109: #{outconv_forward.1} parent=106 // pred_check_branch
          %1836 = sbr.rel (%p1834) target = $region111
        $region110: #{outconv_forward.1} parent=106 // pred_region
          %p1837 = scmp.lt.s32.totalorder %s26, 1
          %s1838 = scalar_select %p1837, %s26, 1
          %s1839 = smul.addr %s1838, 2
          %s1840 = smul.addr %s1839, 4
          %s1841 = scalar_lea.vmem %s14, %s1840
        $region111: #{outconv_forward.1} parent=106 // pred_fallthru
          _
      $region107: #{outconv_forward.1} parent=5 // pred_fallthru
        _
    $region6: #{outconv_forward.1} parent=1 // loop_footer
      %s24 = sadd.s32 1, %s20
    $region7: #{outconv_forward.1} parent=1 // loop_footer_branch
      %19 = sbr.rel target = $region3
    $region8: #{outconv_forward.1} parent=1 // loop_exit
      _

</llo_original>
